<compile_context>
chip_gen: v7x
topology: tpu7x:2x2x1
jax: 0.10.0
libtpu: 0.0.40
codegen_flags: <defaults>
</compile_context>

<pallas_src>
import functools

import jax
import jax.numpy as jnp
from jax.experimental import pallas as pl
from jax.experimental.pallas import tpu as pltpu


# ----------------------------------------------------------------------------
# Activation helper (trace-time static selection)
# ----------------------------------------------------------------------------
def _apply_act(y, act):
    if act == "none":
        return y
    if act == "lrelu":
        return jnp.where(y > 0, y, 0.2 * y)          # ConfNet uses LeakyReLU(0.2)
    if act == "relu":
        return jnp.maximum(y, 0.0)
    if act == "softplus":
        # matches torch.nn.Softplus(beta=1, threshold=20)
        return jnp.where(y > 20.0, y, jnp.log1p(jnp.exp(jnp.minimum(y, 20.0))))
    raise ValueError(act)


# ----------------------------------------------------------------------------
# Fused GroupNorm epilogue: runs on the conv accumulator(s) while they are
# still resident in VMEM.  `parts` is a list of f32 (lout, C) tiles that
# together form one image; `valid` is an f32 (lout, 1) mask that removes the
# junk columns of the flattened-row layout from the statistics.
# ----------------------------------------------------------------------------
def _fused_group_norm(parts, valid, gamma, beta, G, inv_count, eps):
    C = parts[0].shape[-1]
    cg = C // G
    # per-group one-hot membership matrices, built from iota (no extra inputs)
    oh = (jax.lax.broadcasted_iota(jnp.int32, (C, G), 0) // cg
          == jax.lax.broadcasted_iota(jnp.int32, (C, G), 1)).astype(jnp.float32)
    oht = (jax.lax.broadcasted_iota(jnp.int32, (G, C), 1) // cg
           == jax.lax.broadcasted_iota(jnp.int32, (G, C), 0)).astype(jnp.float32)
    s = None
    for acc in parts:
        s1 = jnp.sum(acc * valid, axis=0, keepdims=True)                 # (1, C)
        s = s1 if s is None else s + s1
    mean = jnp.dot(s, oh, preferred_element_type=jnp.float32) * inv_count    # (1, G)
    mean_c = jnp.dot(mean, oht, preferred_element_type=jnp.float32)          # (1, C)
    v = None
    for acc in parts:
        d = (acc - mean_c) * valid
        v1 = jnp.sum(d * d, axis=0, keepdims=True)
        v = v1 if v is None else v + v1
    var = jnp.dot(v, oh, preferred_element_type=jnp.float32) * inv_count     # (1, G)
    rstd_c = jnp.dot(jax.lax.rsqrt(var + eps), oht,
                     preferred_element_type=jnp.float32)                     # (1, C)
    return [(acc - mean_c) * rstd_c * gamma + beta for acc in parts]


# ----------------------------------------------------------------------------
# Pallas kernel 1: direct convolution via tap accumulation (no im2col), with an
# optional fused GroupNorm + activation epilogue.  The (padded, possibly
# parity-split) image lives in VMEM as (P, Lp, Cin) flattened planes; each tap
# is a contiguous sublane slice of one plane, multiplied on the MXU against its
# (Cin, Cout) weight and accumulated in f32.
# ----------------------------------------------------------------------------
def _conv_kernel(*refs, taps, lout, act, gn_cfg):
    if gn_cfg is None:
        x_ref, w_ref, o_ref = refs
    else:
        x_ref, w_ref, valid_ref, g_ref, b_ref, o_ref = refs
    acc = None
    for t, (plane, off) in enumerate(taps):
        xt = x_ref[0, plane, pl.ds(off, lout), :]            # (lout, Cin)
        d = jnp.dot(xt, w_ref[t], preferred_element_type=jnp.float32)
        acc = d if acc is None else acc + d
    if gn_cfg is not None:
        G, inv_count, eps = gn_cfg
        acc = _fused_group_norm([acc], valid_ref[...], g_ref[...], b_ref[...],
                                G, inv_count, eps)[0]
    o_ref[0] = _apply_act(acc, act).astype(o_ref.dtype)


# ----------------------------------------------------------------------------
# Pallas kernel 2: stride-2 transposed conv -- ALL four output parities in one
# kernel (sub-pixel decomposition: four 2x2 stride-1 convs), with the fused
# GroupNorm computed jointly over all parities.
# ----------------------------------------------------------------------------
def _deconv_kernel(*refs, taps_par, lout, act, gn_cfg):
    if gn_cfg is None:
        x_ref, w_ref, o_ref = refs
    else:
        x_ref, w_ref, valid_ref, g_ref, b_ref, o_ref = refs
    parts = []
    for p, taps in enumerate(taps_par):
        acc = None
        for t, (plane, off) in enumerate(taps):
            xt = x_ref[0, plane, pl.ds(off, lout), :]
            d = jnp.dot(xt, w_ref[p, t], preferred_element_type=jnp.float32)
            acc = d if acc is None else acc + d
        parts.append(acc)
    if gn_cfg is not None:
        G, inv_count, eps = gn_cfg
        parts = _fused_group_norm(parts, valid_ref[...], g_ref[...], b_ref[...],
                                  G, inv_count, eps)
    for p in range(4):
        o_ref[0, p] = _apply_act(parts[p], act).astype(o_ref.dtype)


# ----------------------------------------------------------------------------
# Pallas kernel 3: z-bottleneck.  4x4 valid conv (ReLU) followed by a 4x4
# stride-1 pad-0 transposed conv (ReLU) on a 4x4 map -- two fully packed
# (K = 16*C) MXU matmuls.
# ----------------------------------------------------------------------------
def _bottleneck_kernel(x_ref, w5_ref, wt1_ref, o_ref):
    z = jnp.dot(x_ref[0], w5_ref[...], preferred_element_type=jnp.float32)   # (1, zdim)
    z = jnp.maximum(z, 0.0)
    h = jnp.dot(z.astype(wt1_ref.dtype), wt1_ref[...],
                preferred_element_type=jnp.float32)                          # (1, 16*C)
    o_ref[0] = jnp.maximum(h, 0.0).astype(o_ref.dtype)


# ----------------------------------------------------------------------------
# Wrappers
# ----------------------------------------------------------------------------
def _pad_flat(planes, need):
    Lp = planes.shape[2]
    if need > Lp:
        planes = jnp.pad(planes, ((0, 0), (0, 0), (0, need - Lp), (0, 0)))
    return planes


def _gn_extra(gn, lout, Ws, OW, Cout):
    """Extra operands (validity mask, gamma, beta) for the fused GN epilogue."""
    gamma, beta, _ = gn
    valid = ((jnp.arange(lout, dtype=jnp.int32) % Ws) < OW
             ).astype(jnp.float32).reshape(lout, 1)
    args = [valid,
            gamma.reshape(1, Cout).astype(jnp.float32),
            beta.reshape(1, Cout).astype(jnp.float32)]
    specs = [pl.BlockSpec((lout, 1), lambda n: (0, 0)),
             pl.BlockSpec((1, Cout), lambda n: (0, 0)),
             pl.BlockSpec((1, Cout), lambda n: (0, 0))]
    return args, specs


def _conv_call(planes, w_taps, taps, lout, Ws, OW, act, gn, out_dtype):
    N, P, Lp, Cin = planes.shape
    T, _, Cout = w_taps.shape
    args = [planes, w_taps]
    in_specs = [pl.BlockSpec((1, P, Lp, Cin), lambda n: (n, 0, 0, 0)),
                pl.BlockSpec((T, Cin, Cout), lambda n: (0, 0, 0))]
    gn_cfg = None
    if gn is not None:
        G = gn[2]
        gn_cfg = (G, 1.0 / float((lout // Ws) * OW * (Cout // G)), 1e-5)
        extra_args, extra_specs = _gn_extra(gn, lout, Ws, OW, Cout)
        args += extra_args
        in_specs += extra_specs
    kernel = functools.partial(_conv_kernel, taps=tuple(taps), lout=lout,
                               act=act, gn_cfg=gn_cfg)
    return pl.pallas_call(
        kernel,
        out_shape=jax.ShapeDtypeStruct((N, lout, Cout), out_dtype),
        grid=(N,),
        in_specs=in_specs,
        out_specs=pl.BlockSpec((1, lout, Cout), lambda n: (n, 0, 0)),
        compiler_params=pltpu.CompilerParams(dimension_semantics=("parallel",)),
    )(*args)


def conv2d_s1(x, w_taps, k, pad, act="none", gn=None, out_dtype=jnp.bfloat16):
    """Stride-1 KxK conv, symmetric padding, NHWC input, optional fused GN."""
    N, H, W, Cin = x.shape
    xp = jnp.pad(x, ((0, 0), (pad, pad), (pad, pad), (0, 0))) if pad else x
    Hp, Wp = H + 2 * pad, W + 2 * pad
    OH, OW = Hp - k + 1, Wp - k + 1
    Ws = Wp
    lout = OH * Ws
    taps = [(0, kh * Ws + kw) for kh in range(k) for kw in range(k)]
    planes = xp.reshape(N, 1, Hp * Wp, Cin)
    planes = _pad_flat(planes, max(o for _, o in taps) + lout)
    out = _conv_call(planes, w_taps, taps, lout, Ws, OW, act, gn, out_dtype)
    return out.reshape(N, OH, Ws, -1)[:, :, :OW, :]


def conv2d_s2(x, w_taps, act="none", gn=None, out_dtype=jnp.bfloat16):
    """4x4 stride-2 pad-1 conv via parity (space-to-depth) split, NHWC input,
    optional fused GroupNorm + activation epilogue."""
    N, H, W, Cin = x.shape
    xp = jnp.pad(x, ((0, 0), (1, 1), (1, 1), (0, 0)))
    Hs, Ws = (H + 2) // 2, (W + 2) // 2
    planes = xp.reshape(N, Hs, 2, Ws, 2, Cin)
    planes = jnp.transpose(planes, (0, 2, 4, 1, 3, 5)).reshape(N, 4, Hs * Ws, Cin)
    OH, OW = H // 2, W // 2
    lout = OH * Ws
    taps = [((kh % 2) * 2 + (kw % 2), (kh // 2) * Ws + (kw // 2))
            for kh in range(4) for kw in range(4)]
    planes = _pad_flat(planes, max(o for _, o in taps) + lout)
    out = _conv_call(planes, w_taps, taps, lout, Ws, OW, act, gn, out_dtype)
    return out.reshape(N, OH, Ws, -1)[:, :, :OW, :]


def deconv2d_s2(x, w_taps_par, act="none", gn=None, out_dtype=jnp.bfloat16):
    """ConvTranspose2d(k=4, stride=2, pad=1): ONE kernel computes all four
    output parities; optional fused GroupNorm + activation over the full image."""
    N, H, W, Cin = x.shape
    xp = jnp.pad(x, ((0, 0), (1, 1), (1, 1), (0, 0)))
    Hp, Wp = H + 2, W + 2
    Ws = Wp
    lout = H * Ws
    planes = xp.reshape(N, 1, Hp * Wp, Cin)
    planes = _pad_flat(planes, 2 * Ws + 2 + lout)        # worst-case parity (1, 1)
    taps_par = tuple(tuple((0, (rh + dh) * Ws + (rw + dw))
                           for dh in range(2) for dw in range(2))
                     for rh in range(2) for rw in range(2))
    _, T, _, Cout = w_taps_par.shape
    Lp = planes.shape[2]
    args = [planes, w_taps_par]
    in_specs = [pl.BlockSpec((1, 1, Lp, Cin), lambda n: (n, 0, 0, 0)),
                pl.BlockSpec((4, T, Cin, Cout), lambda n: (0, 0, 0, 0))]
    gn_cfg = None
    if gn is not None:
        G = gn[2]
        gn_cfg = (G, 1.0 / float(4 * H * W * (Cout // G)), 1e-5)
        extra_args, extra_specs = _gn_extra(gn, lout, Ws, W, Cout)
        args += extra_args
        in_specs += extra_specs
    kernel = functools.partial(_deconv_kernel, taps_par=taps_par, lout=lout,
                               act=act, gn_cfg=gn_cfg)
    out = pl.pallas_call(
        kernel,
        out_shape=jax.ShapeDtypeStruct((N, 4, lout, Cout), out_dtype),
        grid=(N,),
        in_specs=in_specs,
        out_specs=pl.BlockSpec((1, 4, lout, Cout), lambda n: (n, 0, 0, 0)),
        compiler_params=pltpu.CompilerParams(dimension_semantics=("parallel",)),
    )(*args)
    out = out.reshape(N, 2, 2, H, Ws, Cout)[:, :, :, :, :W, :]
    out = jnp.transpose(out, (0, 3, 1, 4, 2, 5)).reshape(N, 2 * H, 2 * W, Cout)
    return out


def bottleneck(h, w5f, wt1f, out_dtype=jnp.bfloat16):
    """ReLU(conv 4x4 valid -> zdim) followed by ReLU(convT 4x4 s1 p0) on a 4x4
    map, as two fully packed (K = 16*C) MXU matmuls in one kernel."""
    N, Hh, Wh, C = h.shape
    K = Hh * Wh * C
    zdim = w5f.shape[-1]
    xf = h.reshape(N, 1, K)
    out = pl.pallas_call(
        _bottleneck_kernel,
        out_shape=jax.ShapeDtypeStruct((N, 1, K), out_dtype),
        grid=(N,),
        in_specs=[pl.BlockSpec((1, 1, K), lambda n: (n, 0, 0)),
                  pl.BlockSpec((K, zdim), lambda n: (0, 0)),
                  pl.BlockSpec((zdim, K), lambda n: (0, 0))],
        out_specs=pl.BlockSpec((1, 1, K), lambda n: (n, 0, 0)),
        compiler_params=pltpu.CompilerParams(dimension_semantics=("parallel",)),
    )(xf, w5f, wt1f)
    return out.reshape(N, Hh, Wh, C)


# ----------------------------------------------------------------------------
# Weight layout helpers (run once at init / prepare time)
# ----------------------------------------------------------------------------
def _conv_w_taps(w_oihw, dtype=jnp.bfloat16):
    Cout, Cin, KH, KW = w_oihw.shape
    return jnp.transpose(w_oihw, (2, 3, 1, 0)).reshape(KH * KW, Cin, Cout).astype(dtype)


def _convT_s2_w_taps(w_iohw, dtype=jnp.bfloat16):
    # per-output-parity 2x2 sub-kernels of a 4x4 stride-2 pad-1 transposed conv
    pars = []
    for rh in range(2):
        for rw in range(2):
            taps = [w_iohw[:, :, 3 - 2 * dh - rh, 3 - 2 * dw - rw]
                    for dh in range(2) for dw in range(2)]
            pars.append(jnp.stack(taps, axis=0))               # (4, Cin, Cout)
    return jnp.stack(pars, axis=0).astype(dtype)               # (4, 4, Cin, Cout)


def _conv_w_flat(w_oihw, dtype=jnp.bfloat16):
    # (KH*KW*Cin, Cout) for the packed bottleneck matmul (4x4 valid conv)
    Cout, Cin, KH, KW = w_oihw.shape
    return jnp.transpose(w_oihw, (2, 3, 1, 0)).reshape(KH * KW * Cin, Cout).astype(dtype)


def _convT_s1_w_flat(w_iohw, dtype=jnp.bfloat16):
    # (Cin, KH*KW*Cout): a k=4, s=1, p=0 transposed conv applied to a 1x1 input
    # produces the whole 4x4 patch: out[(i*KW+j)*Cout + co] = x[ci] * W[ci, co, i, j]
    Cin, Cout, KH, KW = w_iohw.shape
    return jnp.transpose(w_iohw, (0, 2, 3, 1)).reshape(Cin, KH * KW * Cout).astype(dtype)


# ----------------------------------------------------------------------------
# ConfNet parameters + forward pass
# ----------------------------------------------------------------------------
def init_params(key, cin, zdim, nf):
    def conv_w(key, cout, cin_, k):
        scale = 1.0 / jnp.sqrt(cin_ * k * k)
        return jax.random.normal(key, (cout, cin_, k, k), jnp.float32) * scale

    def convT_w(key, cin_, cout, k):
        scale = 1.0 / jnp.sqrt(cin_ * k * k)
        return jax.random.normal(key, (cin_, cout, k, k), jnp.float32) * scale

    ks = jax.random.split(key, 16)
    p = {}
    p["w1"] = conv_w(ks[0], nf, cin, 4)
    p["g1_w"], p["g1_b"] = jnp.ones((nf,)), jnp.zeros((nf,))
    p["w2"] = conv_w(ks[1], nf * 2, nf, 4)
    p["g2_w"], p["g2_b"] = jnp.ones((nf * 2,)), jnp.zeros((nf * 2,))
    p["w3"] = conv_w(ks[2], nf * 4, nf * 2, 4)
    p["g3_w"], p["g3_b"] = jnp.ones((nf * 4,)), jnp.zeros((nf * 4,))
    p["w4"] = conv_w(ks[3], nf * 8, nf * 4, 4)
    p["w5"] = conv_w(ks[4], zdim, nf * 8, 4)
    p["wt1"] = convT_w(ks[5], zdim, nf * 8, 4)
    p["wt2"] = convT_w(ks[6], nf * 8, nf * 4, 4)
    p["g4_w"], p["g4_b"] = jnp.ones((nf * 4,)), jnp.zeros((nf * 4,))
    p["wt3"] = convT_w(ks[7], nf * 4, nf * 2, 4)
    p["g5_w"], p["g5_b"] = jnp.ones((nf * 2,)), jnp.zeros((nf * 2,))
    # out_net1
    p["o1_wt1"] = convT_w(ks[8], nf * 2, nf, 4)
    p["o1_g1_w"], p["o1_g1_b"] = jnp.ones((nf,)), jnp.zeros((nf,))
    p["o1_wt2"] = convT_w(ks[9], nf, nf, 4)
    p["o1_g2_w"], p["o1_g2_b"] = jnp.ones((nf,)), jnp.zeros((nf,))
    p["o1_w3"] = conv_w(ks[10], 2, nf, 5)
    # out_net2
    p["o2_w1"] = conv_w(ks[11], 2, nf * 2, 3)
    return p


def prepare_params(p, dtype=jnp.bfloat16):
    """One-time weight layout transforms (tap split / flatten + bf16 cast)."""
    pp = {}
    for k in ("w1", "w2", "w3", "w4", "o1_w3", "o2_w1"):
        pp[k] = _conv_w_taps(p[k], dtype)
    pp["w5f"] = _conv_w_flat(p["w5"], dtype)
    pp["wt1f"] = _convT_s1_w_flat(p["wt1"], dtype)
    for k in ("wt2", "wt3", "o1_wt1", "o1_wt2"):
        pp[k] = _convT_s2_w_taps(p[k], dtype)
    for k in p:
        if k.endswith("_w") or k.endswith("_b"):
            pp[k] = p[k].astype(jnp.float32)
    return pp


def confnet_forward(x_nchw, pp):
    x = jnp.transpose(x_nchw, (0, 2, 3, 1)).astype(jnp.bfloat16)   # -> NHWC bf16

    # ---- self.network ----
    h = conv2d_s2(x, pp["w1"], gn=(pp["g1_w"], pp["g1_b"], 16), act="lrelu")
    h = conv2d_s2(h, pp["w2"], gn=(pp["g2_w"], pp["g2_b"], 32), act="lrelu")
    h = conv2d_s2(h, pp["w3"], gn=(pp["g3_w"], pp["g3_b"], 64), act="lrelu")
    h = conv2d_s2(h, pp["w4"], act="lrelu")
    h = bottleneck(h, pp["w5f"], pp["wt1f"])                 # relu(conv5) -> relu(deconv1)
    h = deconv2d_s2(h, pp["wt2"], gn=(pp["g4_w"], pp["g4_b"], 64), act="relu")
    out = deconv2d_s2(h, pp["wt3"], gn=(pp["g5_w"], pp["g5_b"], 32), act="relu")

    # ---- self.out_net1 ----
    a = deconv2d_s2(out, pp["o1_wt1"], gn=(pp["o1_g1_w"], pp["o1_g1_b"], 16), act="relu")
    a = deconv2d_s2(a, pp["o1_wt2"], gn=(pp["o1_g2_w"], pp["o1_g2_b"], 16), act="relu")
    a = conv2d_s1(a, pp["o1_w3"], k=5, pad=2, act="softplus", out_dtype=jnp.float32)

    # ---- self.out_net2 ----
    b = conv2d_s1(out, pp["o2_w1"], k=3, pad=1, act="softplus", out_dtype=jnp.float32)

    # back to NCHW to match the PyTorch module
    return jnp.transpose(a, (0, 3, 1, 2)), jnp.transpose(b, (0, 3, 1, 2))


# ----------------------------------------------------------------------------
# Self-tests (f32 weights) against lax references
# ----------------------------------------------------------------------------
def _check_close(a, b, tag):
    err = float(jnp.max(jnp.abs(a.astype(jnp.float32) - b)))
    scale = float(jnp.max(jnp.abs(b))) + 1e-6
    assert err / scale < 5e-2, (tag, err, scale)


def _ref_gn(y, gamma, beta, G, eps=1e-5):
    N, H, W, C = y.shape
    yg = y.reshape(N, H, W, G, C // G)
    mean = yg.mean(axis=(1, 2, 4), keepdims=True)
    var = yg.var(axis=(1, 2, 4), keepdims=True)
    yn = ((yg - mean) * jax.lax.rsqrt(var + eps)).reshape(N, H, W, C)
    return yn * gamma.reshape(1, 1, 1, C) + beta.reshape(1, 1, 1, C)


def _self_test():
    k0 = jax.random.PRNGKey(1)
    xs = jax.random.normal(k0, (2, 8, 8, 6), jnp.float32)
    dn = ("NHWC", "HWIO", "NHWC")
    gamma = 1.0 + 0.3 * jax.random.normal(jax.random.fold_in(k0, 10), (10,), jnp.float32)
    beta = 0.2 * jax.random.normal(jax.random.fold_in(k0, 11), (10,), jnp.float32)

    # stride-2 conv (+ fused GroupNorm / LeakyReLU)
    wc = jax.random.normal(jax.random.fold_in(k0, 1), (10, 6, 4, 4), jnp.float32) * 0.2
    ref = jax.lax.conv_general_dilated(xs, jnp.transpose(wc, (2, 3, 1, 0)),
                                       window_strides=(2, 2), padding=((1, 1), (1, 1)),
                                       dimension_numbers=dn)
    ours = conv2d_s2(xs, _conv_w_taps(wc, jnp.float32), out_dtype=jnp.float32)
    _check_close(ours, ref, "conv_s2")
    ours = conv2d_s2(xs, _conv_w_taps(wc, jnp.float32), gn=(gamma, beta, 5),
                     act="lrelu", out_dtype=jnp.float32)
    refg = _ref_gn(ref, gamma, beta, 5)
    refg = jnp.where(refg > 0, refg, 0.2 * refg)
    _check_close(ours, refg, "conv_s2+gn")

    # stride-2 transposed conv (+ fused GroupNorm / ReLU)
    wd = jax.random.normal(jax.random.fold_in(k0, 2), (6, 10, 4, 4), jnp.float32) * 0.2
    ref = jax.lax.conv_general_dilated(xs, jnp.transpose(jnp.flip(wd, (2, 3)), (2, 3, 0, 1)),
                                       window_strides=(1, 1), padding=((2, 2), (2, 2)),
                                       lhs_dilation=(2, 2), dimension_numbers=dn)
    ours = deconv2d_s2(xs, _convT_s2_w_taps(wd, jnp.float32), out_dtype=jnp.float32)
    _check_close(ours, ref, "deconv_s2")
    ours = deconv2d_s2(xs, _convT_s2_w_taps(wd, jnp.float32), gn=(gamma, beta, 5),
                       act="relu", out_dtype=jnp.float32)
    refg = jnp.maximum(_ref_gn(ref, gamma, beta, 5), 0.0)
    _check_close(ours, refg, "deconv_s2+gn")

    # stride-1 conv
    w3 = jax.random.normal(jax.random.fold_in(k0, 3), (5, 6, 3, 3), jnp.float32) * 0.2
    ours = conv2d_s1(xs, _conv_w_taps(w3, jnp.float32), k=3, pad=1, out_dtype=jnp.float32)
    ref = jax.lax.conv_general_dilated(xs, jnp.transpose(w3, (2, 3, 1, 0)),
                                       window_strides=(1, 1), padding=((1, 1), (1, 1)),
                                       dimension_numbers=dn)
    _check_close(ours, ref, "conv_s1")

    # bottleneck (4x4 valid conv -> zdim -> 4x4 s1 transposed conv)
    C8t, zt = 16, 8
    xb = jax.random.normal(jax.random.fold_in(k0, 4), (2, 4, 4, C8t), jnp.float32)
    w5r = jax.random.normal(jax.random.fold_in(k0, 5), (zt, C8t, 4, 4), jnp.float32) * 0.2
    wt1r = jax.random.normal(jax.random.fold_in(k0, 6), (zt, C8t, 4, 4), jnp.float32) * 0.2
    z_ref = jnp.maximum(jax.lax.conv_general_dilated(
        xb, jnp.transpose(w5r, (2, 3, 1, 0)), (1, 1), "VALID", dimension_numbers=dn), 0.0)
    y_ref = jnp.maximum(jax.lax.conv_general_dilated(
        z_ref, jnp.transpose(jnp.flip(wt1r, (2, 3)), (2, 3, 0, 1)), (1, 1),
        ((3, 3), (3, 3)), dimension_numbers=dn), 0.0)
    ours = bottleneck(xb, _conv_w_flat(w5r, jnp.float32),
                      _convT_s1_w_flat(wt1r, jnp.float32), out_dtype=jnp.float32)
    _check_close(ours, y_ref, "bottleneck")


if __name__ == "__main__":
    # Encoder downsamples 64 -> 4, then a 4x4 valid conv needs >= 4x4 spatial,
    # so the input must be 64x64.  nf/zdim smaller than defaults but divisible by 16.
    batch, cin, H, W = 2, 3, 64, 64
    nf, zdim = 32, 32

    _self_test()

    key = jax.random.PRNGKey(0)
    kx, kp = jax.random.split(key)
    x = jax.random.normal(kx, (batch, cin, H, W), jnp.float32)
    params = init_params(kp, cin, zdim, nf)
    pp = prepare_params(params)

    fwd = jax.jit(confnet_forward)
    out1, out2 = fwd(x, pp)
    jax.block_until_ready((out1, out2))

    assert out1.shape == (batch, 2, H, W), out1.shape
    assert out2.shape == (batch, 2, H // 4, W // 4), out2.shape
    assert bool(jnp.all(jnp.isfinite(out1))) and bool(jnp.all(jnp.isfinite(out2)))
    assert bool(jnp.all(out1 >= 0)) and bool(jnp.all(out2 >= 0))  # softplus outputs

    print("KERNEL_OK")
</pallas_src>

<mosaic_0001>
module attributes {stable_mosaic.version = 11 : i64} {
  func.func @_conv_kernel(%arg0: i32, %arg1: memref<1x4x26x6xf32, #tpu.memory_space<vmem>>, %arg2: memref<16x6x10xf32, #tpu.memory_space<vmem>>, %arg3: memref<1x20x10xf32, #tpu.memory_space<vmem>>) attributes {dimension_semantics = [#tpu.dimension_semantics<parallel>], iteration_bounds = array<i64: 2>, scalar_prefetch = 0 : i64, scratch_operands = 0 : i64, tpu.core_type = #tpu.core_type<tc>, window_params = [{transform_indices = @transform_0, window_bounds = array<i64: 1, 4, 26, 6>}, {pipeline_mode = #tpu.pipeline_mode<synchronous>, transform_indices = @transform_1, window_bounds = array<i64: 16, 6, 10>}, {transform_indices = @transform_2, window_bounds = array<i64: 1, 20, 10>}]} {
    %c0 = arith.constant 0 : index
    %c0_0 = arith.constant 0 : index
    %c0_1 = arith.constant 0 : index
    %c0_2 = arith.constant 0 : index
    %0 = vector.load %arg1[%c0, %c0_0, %c0_1, %c0_2] : memref<1x4x26x6xf32, #tpu.memory_space<vmem>>, vector<1x1x20x6xf32>
    %1 = vector.shape_cast %0 : vector<1x1x20x6xf32> to vector<20x6xf32>
    %c0_3 = arith.constant 0 : index
    %c0_4 = arith.constant 0 : index
    %c0_5 = arith.constant 0 : index
    %2 = vector.load %arg2[%c0_3, %c0_4, %c0_5] : memref<16x6x10xf32, #tpu.memory_space<vmem>>, vector<1x6x10xf32>
    %3 = vector.shape_cast %2 : vector<1x6x10xf32> to vector<6x10xf32>
    %cst = arith.constant dense<0.000000e+00> : vector<20x10xf32>
    %4 = tpu.matmul %1, %3, %cst {dimension_numbers = #tpu.dot_dimension_numbers<[1], [0], [0], [1], [0, 0, 1, 1], [], []>} : vector<20x6xf32>, vector<6x10xf32>, vector<20x10xf32> -> vector<20x10xf32>
    %c0_6 = arith.constant 0 : index
    %c1 = arith.constant 1 : index
    %c0_7 = arith.constant 0 : index
    %c0_8 = arith.constant 0 : index
    %5 = vector.load %arg1[%c0_6, %c1, %c0_7, %c0_8] : memref<1x4x26x6xf32, #tpu.memory_space<vmem>>, vector<1x1x20x6xf32>
    %6 = vector.shape_cast %5 : vector<1x1x20x6xf32> to vector<20x6xf32>
    %c1_9 = arith.constant 1 : index
    %c0_10 = arith.constant 0 : index
    %c0_11 = arith.constant 0 : index
    %7 = vector.load %arg2[%c1_9, %c0_10, %c0_11] : memref<16x6x10xf32, #tpu.memory_space<vmem>>, vector<1x6x10xf32>
    %8 = vector.shape_cast %7 : vector<1x6x10xf32> to vector<6x10xf32>
    %cst_12 = arith.constant dense<0.000000e+00> : vector<20x10xf32>
    %9 = tpu.matmul %6, %8, %cst_12 {dimension_numbers = #tpu.dot_dimension_numbers<[1], [0], [0], [1], [0, 0, 1, 1], [], []>} : vector<20x6xf32>, vector<6x10xf32>, vector<20x10xf32> -> vector<20x10xf32>
    %10 = arith.addf %4, %9 : vector<20x10xf32>
    %c0_13 = arith.constant 0 : index
    %c0_14 = arith.constant 0 : index
    %c1_15 = arith.constant 1 : index
    %c0_16 = arith.constant 0 : index
    %11 = vector.load %arg1[%c0_13, %c0_14, %c1_15, %c0_16] : memref<1x4x26x6xf32, #tpu.memory_space<vmem>>, vector<1x1x20x6xf32>
    %12 = vector.shape_cast %11 : vector<1x1x20x6xf32> to vector<20x6xf32>
    %c2 = arith.constant 2 : index
    %c0_17 = arith.constant 0 : index
    %c0_18 = arith.constant 0 : index
    %13 = vector.load %arg2[%c2, %c0_17, %c0_18] : memref<16x6x10xf32, #tpu.memory_space<vmem>>, vector<1x6x10xf32>
    %14 = vector.shape_cast %13 : vector<1x6x10xf32> to vector<6x10xf32>
    %cst_19 = arith.constant dense<0.000000e+00> : vector<20x10xf32>
    %15 = tpu.matmul %12, %14, %cst_19 {dimension_numbers = #tpu.dot_dimension_numbers<[1], [0], [0], [1], [0, 0, 1, 1], [], []>} : vector<20x6xf32>, vector<6x10xf32>, vector<20x10xf32> -> vector<20x10xf32>
    %16 = arith.addf %10, %15 : vector<20x10xf32>
    %c0_20 = arith.constant 0 : index
    %c1_21 = arith.constant 1 : index
    %c1_22 = arith.constant 1 : index
    %c0_23 = arith.constant 0 : index
    %17 = vector.load %arg1[%c0_20, %c1_21, %c1_22, %c0_23] : memref<1x4x26x6xf32, #tpu.memory_space<vmem>>, vector<1x1x20x6xf32>
    %18 = vector.shape_cast %17 : vector<1x1x20x6xf32> to vector<20x6xf32>
    %c3 = arith.constant 3 : index
    %c0_24 = arith.constant 0 : index
    %c0_25 = arith.constant 0 : index
    %19 = vector.load %arg2[%c3, %c0_24, %c0_25] : memref<16x6x10xf32, #tpu.memory_space<vmem>>, vector<1x6x10xf32>
    %20 = vector.shape_cast %19 : vector<1x6x10xf32> to vector<6x10xf32>
    %cst_26 = arith.constant dense<0.000000e+00> : vector<20x10xf32>
    %21 = tpu.matmul %18, %20, %cst_26 {dimension_numbers = #tpu.dot_dimension_numbers<[1], [0], [0], [1], [0, 0, 1, 1], [], []>} : vector<20x6xf32>, vector<6x10xf32>, vector<20x10xf32> -> vector<20x10xf32>
    %22 = arith.addf %16, %21 : vector<20x10xf32>
    %c0_27 = arith.constant 0 : index
    %c2_28 = arith.constant 2 : index
    %c0_29 = arith.constant 0 : index
    %c0_30 = arith.constant 0 : index
    %23 = vector.load %arg1[%c0_27, %c2_28, %c0_29, %c0_30] : memref<1x4x26x6xf32, #tpu.memory_space<vmem>>, vector<1x1x20x6xf32>
    %24 = vector.shape_cast %23 : vector<1x1x20x6xf32> to vector<20x6xf32>
    %c4 = arith.constant 4 : index
    %c0_31 = arith.constant 0 : index
    %c0_32 = arith.constant 0 : index
    %25 = vector.load %arg2[%c4, %c0_31, %c0_32] : memref<16x6x10xf32, #tpu.memory_space<vmem>>, vector<1x6x10xf32>
    %26 = vector.shape_cast %25 : vector<1x6x10xf32> to vector<6x10xf32>
    %cst_33 = arith.constant dense<0.000000e+00> : vector<20x10xf32>
    %27 = tpu.matmul %24, %26, %cst_33 {dimension_numbers = #tpu.dot_dimension_numbers<[1], [0], [0], [1], [0, 0, 1, 1], [], []>} : vector<20x6xf32>, vector<6x10xf32>, vector<20x10xf32> -> vector<20x10xf32>
    %28 = arith.addf %22, %27 : vector<20x10xf32>
    %c0_34 = arith.constant 0 : index
    %c3_35 = arith.constant 3 : index
    %c0_36 = arith.constant 0 : index
    %c0_37 = arith.constant 0 : index
    %29 = vector.load %arg1[%c0_34, %c3_35, %c0_36, %c0_37] : memref<1x4x26x6xf32, #tpu.memory_space<vmem>>, vector<1x1x20x6xf32>
    %30 = vector.shape_cast %29 : vector<1x1x20x6xf32> to vector<20x6xf32>
    %c5 = arith.constant 5 : index
    %c0_38 = arith.constant 0 : index
    %c0_39 = arith.constant 0 : index
    %31 = vector.load %arg2[%c5, %c0_38, %c0_39] : memref<16x6x10xf32, #tpu.memory_space<vmem>>, vector<1x6x10xf32>
    %32 = vector.shape_cast %31 : vector<1x6x10xf32> to vector<6x10xf32>
    %cst_40 = arith.constant dense<0.000000e+00> : vector<20x10xf32>
    %33 = tpu.matmul %30, %32, %cst_40 {dimension_numbers = #tpu.dot_dimension_numbers<[1], [0], [0], [1], [0, 0, 1, 1], [], []>} : vector<20x6xf32>, vector<6x10xf32>, vector<20x10xf32> -> vector<20x10xf32>
    %34 = arith.addf %28, %33 : vector<20x10xf32>
    %c0_41 = arith.constant 0 : index
    %c2_42 = arith.constant 2 : index
    %c1_43 = arith.constant 1 : index
    %c0_44 = arith.constant 0 : index
    %35 = vector.load %arg1[%c0_41, %c2_42, %c1_43, %c0_44] : memref<1x4x26x6xf32, #tpu.memory_space<vmem>>, vector<1x1x20x6xf32>
    %36 = vector.shape_cast %35 : vector<1x1x20x6xf32> to vector<20x6xf32>
    %c6 = arith.constant 6 : index
    %c0_45 = arith.constant 0 : index
    %c0_46 = arith.constant 0 : index
    %37 = vector.load %arg2[%c6, %c0_45, %c0_46] : memref<16x6x10xf32, #tpu.memory_space<vmem>>, vector<1x6x10xf32>
    %38 = vector.shape_cast %37 : vector<1x6x10xf32> to vector<6x10xf32>
    %cst_47 = arith.constant dense<0.000000e+00> : vector<20x10xf32>
    %39 = tpu.matmul %36, %38, %cst_47 {dimension_numbers = #tpu.dot_dimension_numbers<[1], [0], [0], [1], [0, 0, 1, 1], [], []>} : vector<20x6xf32>, vector<6x10xf32>, vector<20x10xf32> -> vector<20x10xf32>
    %40 = arith.addf %34, %39 : vector<20x10xf32>
    %c0_48 = arith.constant 0 : index
    %c3_49 = arith.constant 3 : index
    %c1_50 = arith.constant 1 : index
    %c0_51 = arith.constant 0 : index
    %41 = vector.load %arg1[%c0_48, %c3_49, %c1_50, %c0_51] : memref<1x4x26x6xf32, #tpu.memory_space<vmem>>, vector<1x1x20x6xf32>
    %42 = vector.shape_cast %41 : vector<1x1x20x6xf32> to vector<20x6xf32>
    %c7 = arith.constant 7 : index
    %c0_52 = arith.constant 0 : index
    %c0_53 = arith.constant 0 : index
    %43 = vector.load %arg2[%c7, %c0_52, %c0_53] : memref<16x6x10xf32, #tpu.memory_space<vmem>>, vector<1x6x10xf32>
    %44 = vector.shape_cast %43 : vector<1x6x10xf32> to vector<6x10xf32>
    %cst_54 = arith.constant dense<0.000000e+00> : vector<20x10xf32>
    %45 = tpu.matmul %42, %44, %cst_54 {dimension_numbers = #tpu.dot_dimension_numbers<[1], [0], [0], [1], [0, 0, 1, 1], [], []>} : vector<20x6xf32>, vector<6x10xf32>, vector<20x10xf32> -> vector<20x10xf32>
    %46 = arith.addf %40, %45 : vector<20x10xf32>
    %c0_55 = arith.constant 0 : index
    %c0_56 = arith.constant 0 : index
    %c5_57 = arith.constant 5 : index
    %c0_58 = arith.constant 0 : index
    %47 = vector.load %arg1[%c0_55, %c0_56, %c5_57, %c0_58] : memref<1x4x26x6xf32, #tpu.memory_space<vmem>>, vector<1x1x20x6xf32>
    %48 = vector.shape_cast %47 : vector<1x1x20x6xf32> to vector<20x6xf32>
    %c8 = arith.constant 8 : index
    %c0_59 = arith.constant 0 : index
    %c0_60 = arith.constant 0 : index
    %49 = vector.load %arg2[%c8, %c0_59, %c0_60] : memref<16x6x10xf32, #tpu.memory_space<vmem>>, vector<1x6x10xf32>
    %50 = vector.shape_cast %49 : vector<1x6x10xf32> to vector<6x10xf32>
    %cst_61 = arith.constant dense<0.000000e+00> : vector<20x10xf32>
    %51 = tpu.matmul %48, %50, %cst_61 {dimension_numbers = #tpu.dot_dimension_numbers<[1], [0], [0], [1], [0, 0, 1, 1], [], []>} : vector<20x6xf32>, vector<6x10xf32>, vector<20x10xf32> -> vector<20x10xf32>
    %52 = arith.addf %46, %51 : vector<20x10xf32>
    %c0_62 = arith.constant 0 : index
    %c1_63 = arith.constant 1 : index
    %c5_64 = arith.constant 5 : index
    %c0_65 = arith.constant 0 : index
    %53 = vector.load %arg1[%c0_62, %c1_63, %c5_64, %c0_65] : memref<1x4x26x6xf32, #tpu.memory_space<vmem>>, vector<1x1x20x6xf32>
    %54 = vector.shape_cast %53 : vector<1x1x20x6xf32> to vector<20x6xf32>
    %c9 = arith.constant 9 : index
    %c0_66 = arith.constant 0 : index
    %c0_67 = arith.constant 0 : index
    %55 = vector.load %arg2[%c9, %c0_66, %c0_67] : memref<16x6x10xf32, #tpu.memory_space<vmem>>, vector<1x6x10xf32>
    %56 = vector.shape_cast %55 : vector<1x6x10xf32> to vector<6x10xf32>
    %cst_68 = arith.constant dense<0.000000e+00> : vector<20x10xf32>
    %57 = tpu.matmul %54, %56, %cst_68 {dimension_numbers = #tpu.dot_dimension_numbers<[1], [0], [0], [1], [0, 0, 1, 1], [], []>} : vector<20x6xf32>, vector<6x10xf32>, vector<20x10xf32> -> vector<20x10xf32>
    %58 = arith.addf %52, %57 : vector<20x10xf32>
    %c0_69 = arith.constant 0 : index
    %c0_70 = arith.constant 0 : index
    %c6_71 = arith.constant 6 : index
    %c0_72 = arith.constant 0 : index
    %59 = vector.load %arg1[%c0_69, %c0_70, %c6_71, %c0_72] : memref<1x4x26x6xf32, #tpu.memory_space<vmem>>, vector<1x1x20x6xf32>
    %60 = vector.shape_cast %59 : vector<1x1x20x6xf32> to vector<20x6xf32>
    %c10 = arith.constant 10 : index
    %c0_73 = arith.constant 0 : index
    %c0_74 = arith.constant 0 : index
    %61 = vector.load %arg2[%c10, %c0_73, %c0_74] : memref<16x6x10xf32, #tpu.memory_space<vmem>>, vector<1x6x10xf32>
    %62 = vector.shape_cast %61 : vector<1x6x10xf32> to vector<6x10xf32>
    %cst_75 = arith.constant dense<0.000000e+00> : vector<20x10xf32>
    %63 = tpu.matmul %60, %62, %cst_75 {dimension_numbers = #tpu.dot_dimension_numbers<[1], [0], [0], [1], [0, 0, 1, 1], [], []>} : vector<20x6xf32>, vector<6x10xf32>, vector<20x10xf32> -> vector<20x10xf32>
    %64 = arith.addf %58, %63 : vector<20x10xf32>
    %c0_76 = arith.constant 0 : index
    %c1_77 = arith.constant 1 : index
    %c6_78 = arith.constant 6 : index
    %c0_79 = arith.constant 0 : index
    %65 = vector.load %arg1[%c0_76, %c1_77, %c6_78, %c0_79] : memref<1x4x26x6xf32, #tpu.memory_space<vmem>>, vector<1x1x20x6xf32>
    %66 = vector.shape_cast %65 : vector<1x1x20x6xf32> to vector<20x6xf32>
    %c11 = arith.constant 11 : index
    %c0_80 = arith.constant 0 : index
    %c0_81 = arith.constant 0 : index
    %67 = vector.load %arg2[%c11, %c0_80, %c0_81] : memref<16x6x10xf32, #tpu.memory_space<vmem>>, vector<1x6x10xf32>
    %68 = vector.shape_cast %67 : vector<1x6x10xf32> to vector<6x10xf32>
    %cst_82 = arith.constant dense<0.000000e+00> : vector<20x10xf32>
    %69 = tpu.matmul %66, %68, %cst_82 {dimension_numbers = #tpu.dot_dimension_numbers<[1], [0], [0], [1], [0, 0, 1, 1], [], []>} : vector<20x6xf32>, vector<6x10xf32>, vector<20x10xf32> -> vector<20x10xf32>
    %70 = arith.addf %64, %69 : vector<20x10xf32>
    %c0_83 = arith.constant 0 : index
    %c2_84 = arith.constant 2 : index
    %c5_85 = arith.constant 5 : index
    %c0_86 = arith.constant 0 : index
    %71 = vector.load %arg1[%c0_83, %c2_84, %c5_85, %c0_86] : memref<1x4x26x6xf32, #tpu.memory_space<vmem>>, vector<1x1x20x6xf32>
    %72 = vector.shape_cast %71 : vector<1x1x20x6xf32> to vector<20x6xf32>
    %c12 = arith.constant 12 : index
    %c0_87 = arith.constant 0 : index
    %c0_88 = arith.constant 0 : index
    %73 = vector.load %arg2[%c12, %c0_87, %c0_88] : memref<16x6x10xf32, #tpu.memory_space<vmem>>, vector<1x6x10xf32>
    %74 = vector.shape_cast %73 : vector<1x6x10xf32> to vector<6x10xf32>
    %cst_89 = arith.constant dense<0.000000e+00> : vector<20x10xf32>
    %75 = tpu.matmul %72, %74, %cst_89 {dimension_numbers = #tpu.dot_dimension_numbers<[1], [0], [0], [1], [0, 0, 1, 1], [], []>} : vector<20x6xf32>, vector<6x10xf32>, vector<20x10xf32> -> vector<20x10xf32>
    %76 = arith.addf %70, %75 : vector<20x10xf32>
    %c0_90 = arith.constant 0 : index
    %c3_91 = arith.constant 3 : index
    %c5_92 = arith.constant 5 : index
    %c0_93 = arith.constant 0 : index
    %77 = vector.load %arg1[%c0_90, %c3_91, %c5_92, %c0_93] : memref<1x4x26x6xf32, #tpu.memory_space<vmem>>, vector<1x1x20x6xf32>
    %78 = vector.shape_cast %77 : vector<1x1x20x6xf32> to vector<20x6xf32>
    %c13 = arith.constant 13 : index
    %c0_94 = arith.constant 0 : index
    %c0_95 = arith.constant 0 : index
    %79 = vector.load %arg2[%c13, %c0_94, %c0_95] : memref<16x6x10xf32, #tpu.memory_space<vmem>>, vector<1x6x10xf32>
    %80 = vector.shape_cast %79 : vector<1x6x10xf32> to vector<6x10xf32>
    %cst_96 = arith.constant dense<0.000000e+00> : vector<20x10xf32>
    %81 = tpu.matmul %78, %80, %cst_96 {dimension_numbers = #tpu.dot_dimension_numbers<[1], [0], [0], [1], [0, 0, 1, 1], [], []>} : vector<20x6xf32>, vector<6x10xf32>, vector<20x10xf32> -> vector<20x10xf32>
    %82 = arith.addf %76, %81 : vector<20x10xf32>
    %c0_97 = arith.constant 0 : index
    %c2_98 = arith.constant 2 : index
    %c6_99 = arith.constant 6 : index
    %c0_100 = arith.constant 0 : index
    %83 = vector.load %arg1[%c0_97, %c2_98, %c6_99, %c0_100] : memref<1x4x26x6xf32, #tpu.memory_space<vmem>>, vector<1x1x20x6xf32>
    %84 = vector.shape_cast %83 : vector<1x1x20x6xf32> to vector<20x6xf32>
    %c14 = arith.constant 14 : index
    %c0_101 = arith.constant 0 : index
    %c0_102 = arith.constant 0 : index
    %85 = vector.load %arg2[%c14, %c0_101, %c0_102] : memref<16x6x10xf32, #tpu.memory_space<vmem>>, vector<1x6x10xf32>
    %86 = vector.shape_cast %85 : vector<1x6x10xf32> to vector<6x10xf32>
    %cst_103 = arith.constant dense<0.000000e+00> : vector<20x10xf32>
    %87 = tpu.matmul %84, %86, %cst_103 {dimension_numbers = #tpu.dot_dimension_numbers<[1], [0], [0], [1], [0, 0, 1, 1], [], []>} : vector<20x6xf32>, vector<6x10xf32>, vector<20x10xf32> -> vector<20x10xf32>
    %88 = arith.addf %82, %87 : vector<20x10xf32>
    %c0_104 = arith.constant 0 : index
    %c3_105 = arith.constant 3 : index
    %c6_106 = arith.constant 6 : index
    %c0_107 = arith.constant 0 : index
    %89 = vector.load %arg1[%c0_104, %c3_105, %c6_106, %c0_107] : memref<1x4x26x6xf32, #tpu.memory_space<vmem>>, vector<1x1x20x6xf32>
    %90 = vector.shape_cast %89 : vector<1x1x20x6xf32> to vector<20x6xf32>
    %c15 = arith.constant 15 : index
    %c0_108 = arith.constant 0 : index
    %c0_109 = arith.constant 0 : index
    %91 = vector.load %arg2[%c15, %c0_108, %c0_109] : memref<16x6x10xf32, #tpu.memory_space<vmem>>, vector<1x6x10xf32>
    %92 = vector.shape_cast %91 : vector<1x6x10xf32> to vector<6x10xf32>
    %cst_110 = arith.constant dense<0.000000e+00> : vector<20x10xf32>
    %93 = tpu.matmul %90, %92, %cst_110 {dimension_numbers = #tpu.dot_dimension_numbers<[1], [0], [0], [1], [0, 0, 1, 1], [], []>} : vector<20x6xf32>, vector<6x10xf32>, vector<20x10xf32> -> vector<20x10xf32>
    %94 = arith.addf %88, %93 : vector<20x10xf32>
    %c0_111 = arith.constant 0 : index
    %c0_112 = arith.constant 0 : index
    %c0_113 = arith.constant 0 : index
    %95 = vector.load %arg3[%c0_111, %c0_112, %c0_113] : memref<1x20x10xf32, #tpu.memory_space<vmem>>, vector<1x20x10xf32>
    %96 = vector.shape_cast %95 : vector<1x20x10xf32> to vector<20x10xf32>
    %97 = vector.shape_cast %94 : vector<20x10xf32> to vector<1x20x10xf32>
    tpu.vector_store %arg3[%c0_111, %c0_112, %c0_113], %97 {strides = array<i32>} : memref<1x20x10xf32, #tpu.memory_space<vmem>>, vector<1x20x10xf32>,
    return
  }
  func.func @transform_0(%arg0: i32) -> (i32, i32, i32, i32) {
    %c0_i32 = arith.constant 0 : i32
    %c0_i32_0 = arith.constant 0 : i32
    %c0_i32_1 = arith.constant 0 : i32
    %c0_i32_2 = arith.constant 0 : i32
    return %arg0, %c0_i32, %c0_i32_0, %c0_i32_1 : i32, i32, i32, i32
  }
  func.func @transform_1(%arg0: i32) -> (i32, i32, i32) {
    %c0_i32 = arith.constant 0 : i32
    %c0_i32_0 = arith.constant 0 : i32
    %c0_i32_1 = arith.constant 0 : i32
    %c0_i32_2 = arith.constant 0 : i32
    return %c0_i32, %c0_i32_0, %c0_i32_1 : i32, i32, i32
  }
  func.func @transform_2(%arg0: i32) -> (i32, i32, i32) {
    %c0_i32 = arith.constant 0 : i32
    %c0_i32_0 = arith.constant 0 : i32
    %c0_i32_1 = arith.constant 0 : i32
    return %arg0, %c0_i32, %c0_i32_0 : i32, i32, i32
  }
}

</mosaic_0001>

<llo_original>
// kernel: tpu_custom_call.1
$region0: #{tpu_custom_call.1}
  #allocation0 [shape = 'u32[]', space=smem, size = 0x4, offset = 0x4, fixed_abs, tag = 'smem constant byte address 0x4 - core index']
  #allocation1 [shape = 'u32[144,128]{1,0:T(1,128)}', space=vmem, size = 0x12000, scoped, tag = 'internal scratch']
  %s0 = inlined_call_operand.vmem [shape: f32[2,4,26,6], index: 0, kind: input, shape index: {}]
  %s1 = inlined_call_operand.vmem [shape: f32[16,6,10], index: 1, kind: input, shape index: {}]
  %s2 = inlined_call_operand.vmem [shape: f32[2,20,10], index: 2, kind: output, shape index: {}]
  %s3 = sld [smem:[#allocation0]]
  $region41: #{tpu_custom_call.1} parent=0
    _
  %s5 = ssub.s32 1, %s3
  %s6 = scalar_select 0, %s5, %s3
  loop: start=0, step=1, limit=4
  $region2: #{tpu_custom_call.1} parent=0 // loop_pre_header
    _
  $region3: #{tpu_custom_call.1} parent=0 // loop_header
    %s8 = sphi 0, %s12
    %p9 = scmp.ge.s32.totalorder %s8, 4
    %s18 = sphi 0, %s20
    %s21 = sphi 0, %s18
    %s22 = sphi 0, %s21
    %s38 = sphi 0, %s22
    %s42 = sphi 0, %s42
    %s44 = sphi 0, %s42
    %s45 = sphi 0, %s44
    %s59 = sphi 0, %s45
    %s65 = sphi 0, %s67
    %s68 = sphi 0, %s65
    %s69 = sphi 0, %s68
    %s85 = sphi 0, %s69
  $region4: #{tpu_custom_call.1} parent=0 // loop_header_branch
    %11 = sbr.rel (%p9) target = $region8
  $region5: #{tpu_custom_call.1} parent=0 // loop_body
    %s13 = ssub.s32 %s8, 1
    %s14 = ssub.s32 %s8, 2
    %s15 = sadd.s32 %s8, 1
    %s16 = ssub.s32 %s8, %s15
    %p17 = scmp.eq.s32.totalorder %s16, 0
    %s19 = sadd.s32 %s18, 1
    %s20 = scalar_select %p17, %s18, %s19
    %p23 = pneg %p17
    %p24 = scmp.eq.s32.totalorder %s8, 1
    %p25 = por %p23, %p24
    %p26 = scmp.ne.s32.totalorder %s18, %s21
    %p27 = scmp.eq.s32.totalorder %s8, 0
    %p28 = por %p26, %p27
    %p29 = scmp.ne.s32.totalorder %s18, %s21
    %p30 = scmp.eq.s32.totalorder %s13, 1
    %p31 = por %p29, %p30
    %p32 = scmp.ne.s32.totalorder %s21, %s22
    %p33 = scmp.eq.s32.totalorder %s13, 0
    %p34 = por %p32, %p33
    %p35 = scmp.ne.s32.totalorder %s21, %s22
    %p36 = scmp.eq.s32.totalorder %s14, 1
    %p37 = por %p35, %p36
    %p39 = scmp.ne.s32.totalorder %s22, %s38
    %p40 = scmp.eq.s32.totalorder %s14, 0
    %p41 = por %p39, %p40
    %s43 = sadd.s32 %s42, 1
    %p46 = scmp.eq.s32.totalorder %s8, 1
    %p47 = scmp.ne.s32.totalorder %s42, %s44
    %p48 = scmp.eq.s32.totalorder %s8, 0
    %p49 = por %p47, %p48
    %p50 = scmp.ne.s32.totalorder %s42, %s44
    %p51 = scmp.eq.s32.totalorder %s13, 1
    %p52 = por %p50, %p51
    %p53 = scmp.ne.s32.totalorder %s44, %s45
    %p54 = scmp.eq.s32.totalorder %s13, 0
    %p55 = por %p53, %p54
    %p56 = scmp.ne.s32.totalorder %s44, %s45
    %p57 = scmp.eq.s32.totalorder %s14, 1
    %p58 = por %p56, %p57
    %p60 = scmp.ne.s32.totalorder %s45, %s59
    %p61 = scmp.eq.s32.totalorder %s14, 0
    %p62 = por %p60, %p61
    %s63 = ssub.s32 %s8, %s15
    %p64 = scmp.eq.s32.totalorder %s63, 0
    %s66 = sadd.s32 %s65, 1
    %s67 = scalar_select %p64, %s65, %s66
    %p70 = pneg %p64
    %p71 = scmp.eq.s32.totalorder %s8, 1
    %p72 = por %p70, %p71
    %p73 = scmp.ne.s32.totalorder %s65, %s68
    %p74 = scmp.eq.s32.totalorder %s8, 0
    %p75 = por %p73, %p74
    %p76 = scmp.ne.s32.totalorder %s65, %s68
    %p77 = scmp.eq.s32.totalorder %s13, 1
    %p78 = por %p76, %p77
    %p79 = scmp.ne.s32.totalorder %s68, %s69
    %p80 = scmp.eq.s32.totalorder %s13, 0
    %p81 = por %p79, %p80
    %p82 = scmp.ne.s32.totalorder %s68, %s69
    %p83 = scmp.eq.s32.totalorder %s14, 1
    %p84 = por %p82, %p83
    %p86 = scmp.ne.s32.totalorder %s69, %s85
    %p87 = scmp.eq.s32.totalorder %s14, 0
    %p88 = por %p86, %p87
    %p89 = scmp.le.s32.totalorder 1, %s8
    %p90 = scmp.lt.s32.totalorder %s8, 3
    %p91 = pnand %p89, %p90
    %p92 = pneg %p91
    // Predicated region
    $region9: #{tpu_custom_call.1} parent=5 // pred_check
      _
    $region10: #{tpu_custom_call.1} parent=5 // pred_check_branch
      %94 = sbr.rel (%p91) target = $region12
    $region11: #{tpu_custom_call.1} parent=5 // pred_region
      %s95 = ssub.s32 %s8, 1
      // Predicated region
      $region13: #{tpu_custom_call.1} parent=11 // pred_check
        %p96 = pneg %p55
      $region14: #{tpu_custom_call.1} parent=11 // pred_check_branch
        %98 = sbr.rel (%p96) target = $region16
      $region15: #{tpu_custom_call.1} parent=11 // pred_region
        _
      $region16: #{tpu_custom_call.1} parent=11 // pred_fallthru
        _
    $region12: #{tpu_custom_call.1} parent=5 // pred_fallthru
      _
    %p99 = scmp.lt.s32.totalorder %s8, 2
    // Predicated region
    $region17: #{tpu_custom_call.1} parent=5 // pred_check
      %p100 = pneg %p99
    $region18: #{tpu_custom_call.1} parent=5 // pred_check_branch
      %102 = sbr.rel (%p100) target = $region20
    $region19: #{tpu_custom_call.1} parent=5 // pred_region
      // Predicated region
      $region21: #{tpu_custom_call.1} parent=19 // pred_check
        %p103 = pneg %p28
      $region22: #{tpu_custom_call.1} parent=19 // pred_check_branch
        %105 = sbr.rel (%p103) target = $region24
      $region23: #{tpu_custom_call.1} parent=19 // pred_region
        %p106 = scmp.lt.s32.totalorder %s8, 1
        %s107 = scalar_select %p106, %s8, 1
        %s108 = smul.addr %s107, 16
        %s109 = smul.addr %s108, 8
        %s110 = scalar_lea.vmem %s0, %s109
      $region24: #{tpu_custom_call.1} parent=19 // pred_fallthru
        _
    $region20: #{tpu_custom_call.1} parent=5 // pred_fallthru
      _
    %p111 = scmp.le.s32.totalorder 1, %s8
    %p112 = scmp.lt.s32.totalorder %s8, 3
    %p113 = pnand %p111, %p112
    %p114 = pneg %p113
    // Predicated region
    $region25: #{tpu_custom_call.1} parent=5 // pred_check
      _
    $region26: #{tpu_custom_call.1} parent=5 // pred_check_branch
      %116 = sbr.rel (%p113) target = $region28
    $region27: #{tpu_custom_call.1} parent=5 // pred_region
      %s117 = ssub.s32 %s8, 1
      %p118 = scmp.lt.s32.totalorder %s13, 1
      %s119 = scalar_select %p118, %s13, 1
      %s120 = smul.addr %s119, 16
      %s121 = smul.addr %s120, 8
      %s122 = scalar_lea.vmem %s0, %s121
      %p123 = pneg %p34
      %p124 = pneg %p31
      %p125 = pneg %p55
      %p126 = pneg %p52
      %p127 = pneg %p81
      %p128 = pneg %p78
      %p129 = scmp.lt.s32.totalorder %s13, 1
      %s130 = scalar_select %p129, %s13, 1
      %s131 = smul.addr %s130, 3
      %s132 = smul.addr %s131, 8
      %s133 = scalar_lea.vmem %s2, %s132
      %p134 = scmp.lt.s32.totalorder %s13, 1
      %s135 = scalar_select %p134, %s13, 1
      %s136 = smul.addr %s135, 16
      %s137 = smul.addr %s136, 8
      %s138 = scalar_lea.vmem %s0, %s137
      %p139 = scmp.lt.s32.totalorder %s13, 1
      %s140 = scalar_select %p139, %s13, 1
      %s141 = smul.addr %s140, 3
      %s142 = smul.addr %s141, 8
      %s143 = scalar_lea.vmem %s2, %s142
      %v144 = vld [vmem:[%s138] sm:$0xff]
      %v145 = vld [vmem:[%s138 + $0x8] sm:$0xff]
      %v146 = vld [vmem:[%s138 + $0x10] sm:$0xf]
      %v147 = vld [vmem:[%s1] sm:$0x3f]
      %s148 = scalar_lea.vmem %s138, 32
      %v149 = vld [vmem:[%s148] sm:$0xff]
      %v150 = vld [vmem:[%s148 + $0x8] sm:$0xff]
      %v151 = vld [vmem:[%s148 + $0x10] sm:$0xf]
      %s152 = scalar_lea.vmem %s1, 8
      %v153 = vld [vmem:[%s152] sm:$0x3f]
      %vm154 = vcmask 48128
      %v156 = vsel %vm154, %v149, 0
      %v159 = vsel %vm154, %v150, 0
      %v162 = vsel %vm154, %v151, 0
      %vm164 = vcmask 1045504
      %v166 = vsel %vm164, %v153, 0
      %168 = vmatprep.subr.mxu0 0.0
      %169 = vmatpush1.msra.mxu0 %v166
      %170 = vmatprep.subr.mxu0 0.0
      %171 = vmatpush1.msra.mxu0 0.0
      %172 = vmatprep.subr.mxu0 0.0
      %173 = vmatpush1.msra.mxu0 0.0
      %174 = vmatprep.subr.mxu0 0.0
      %175 = vmatpush1.msra.mxu0 0.0
      %176 = vmatprep.subr.mxu0 0.0
      %177 = vmatpush1.msra.mxu0 0.0
      %178 = vmatprep.subr.mxu0 0.0
      %179 = vmatpush1.msra.mxu0 0.0
      %180 = vmatprep.subr.mxu0 0.0
      %181 = vmatpush1.msra.mxu0 0.0
      %182 = vmatprep.subr.mxu0 0.0
      %183 = vmatpush1.msra.mxu0 0.0
      %184 = vmatprep.subr.mxu0 0.0
      %185 = vmatpush1.msra.mxu0 0.0
      %186 = vmatprep.subr.mxu0 0.0
      %187 = vmatpush1.msra.mxu0 0.0
      %188 = vmatprep.subr.mxu0 0.0
      %189 = vmatpush1.msra.mxu0 0.0
      %190 = vmatprep.subr.mxu0 0.0
      %191 = vmatpush1.msra.mxu0 0.0
      %192 = vmatprep.subr.mxu0 0.0
      %193 = vmatpush1.msra.mxu0 0.0
      %194 = vmatprep.subr.mxu0 0.0
      %195 = vmatpush1.msra.mxu0 0.0
      %196 = vmatprep.subr.mxu0 0.0
      %197 = vmatpush1.msra.mxu0 0.0
      %198 = vmatprep.subr.mxu0 0.0
      %199 = vmatpush1.msra.mxu0 0.0
      %200 = vmatprep.subr.mxu0 0.0
      %201 = vmatpush1.msra.mxu0 0.0
      %202 = vmatprep.subr.mxu0 0.0
      %203 = vmatpush1.msra.mxu0 0.0
      %204 = vmatprep.subr.mxu0 0.0
      %205 = vmatpush1.msra.mxu0 0.0
      %206 = vmatprep.subr.mxu0 0.0
      %207 = vmatpush1.msra.mxu0 0.0
      %208 = vmatprep.subr.mxu0 0.0
      %209 = vmatpush1.msra.mxu0 0.0
      %210 = vmatprep.subr.mxu0 0.0
      %211 = vmatpush1.msra.mxu0 0.0
      %212 = vmatprep.subr.mxu0 0.0
      %213 = vmatpush1.msra.mxu0 0.0
      %214 = vmatprep.subr.mxu0 0.0
      %215 = vmatpush1.msra.mxu0 0.0
      %216 = vmatprep.subr.mxu0 0.0
      %217 = vmatpush1.msra.mxu0 0.0
      %218 = vmatprep.subr.mxu0 0.0
      %219 = vmatpush1.msra.mxu0 0.0
      %220 = vmatprep.subr.mxu0 0.0
      %221 = vmatpush1.msra.mxu0 0.0
      %222 = vmatprep.subr.mxu0 0.0
      %223 = vmatpush1.msra.mxu0 0.0
      %224 = vmatprep.subr.mxu0 0.0
      %225 = vmatpush1.msra.mxu0 0.0
      %226 = vmatprep.subr.mxu0 0.0
      %227 = vmatpush1.msra.mxu0 0.0
      %228 = vmatprep.subr.mxu0 0.0
      %229 = vmatpush1.msra.mxu0 0.0
      %230 = vmatprep.subr.mxu0 0.0
      %231 = vmatpush1.msra.mxu0 0.0
      %232 = vmatprep.mubr.f32.mxu0 0.0
      %233 = vmatmul.mubr.f32.gmra.mrb[0].mxu0 %v156
      %v234 = vpop.f32.mrb[0].mxu0
      %v235 = vadd.f32 0.0, %v234
      %v236 = vpop.f32.mrb[0].mxu0
      %237 = vmatprep.mubr.f32.mxu0 0.0
      %238 = vmatmul.mubr.f32.gmra.mrb[0].mxu0 %v159
      %v239 = vpop.f32.mrb[0].mxu0
      %v240 = vadd.f32 0.0, %v239
      %v241 = vpop.f32.mrb[0].mxu0
      %242 = vmatprep.mubr.f32.mxu0 0.0
      %243 = vmatmul.mubr.f32.gmra.mrb[0].mxu0 %v162
      %v244 = vpop.f32.mrb[0].mxu0
      %v245 = vadd.f32 0.0, %v244
      %v246 = vpop.f32.mrb[0].mxu0
      %247 = vdwg.mxu0
      %v249 = vsel %vm154, %v144, 0
      %v252 = vsel %vm154, %v145, 0
      %v255 = vsel %vm154, %v146, 0
      %v258 = vsel %vm164, %v147, 0
      %260 = vmatprep.subr.mxu0 0.0
      %261 = vmatpush1.msra.mxu0 %v258
      %262 = vmatprep.subr.mxu0 0.0
      %263 = vmatpush1.msra.mxu0 0.0
      %264 = vmatprep.subr.mxu0 0.0
      %265 = vmatpush1.msra.mxu0 0.0
      %266 = vmatprep.subr.mxu0 0.0
      %267 = vmatpush1.msra.mxu0 0.0
      %268 = vmatprep.subr.mxu0 0.0
      %269 = vmatpush1.msra.mxu0 0.0
      %270 = vmatprep.subr.mxu0 0.0
      %271 = vmatpush1.msra.mxu0 0.0
      %272 = vmatprep.subr.mxu0 0.0
      %273 = vmatpush1.msra.mxu0 0.0
      %274 = vmatprep.subr.mxu0 0.0
      %275 = vmatpush1.msra.mxu0 0.0
      %276 = vmatprep.subr.mxu0 0.0
      %277 = vmatpush1.msra.mxu0 0.0
      %278 = vmatprep.subr.mxu0 0.0
      %279 = vmatpush1.msra.mxu0 0.0
      %280 = vmatprep.subr.mxu0 0.0
      %281 = vmatpush1.msra.mxu0 0.0
      %282 = vmatprep.subr.mxu0 0.0
      %283 = vmatpush1.msra.mxu0 0.0
      %284 = vmatprep.subr.mxu0 0.0
      %285 = vmatpush1.msra.mxu0 0.0
      %286 = vmatprep.subr.mxu0 0.0
      %287 = vmatpush1.msra.mxu0 0.0
      %288 = vmatprep.subr.mxu0 0.0
      %289 = vmatpush1.msra.mxu0 0.0
      %290 = vmatprep.subr.mxu0 0.0
      %291 = vmatpush1.msra.mxu0 0.0
      %292 = vmatprep.subr.mxu0 0.0
      %293 = vmatpush1.msra.mxu0 0.0
      %294 = vmatprep.subr.mxu0 0.0
      %295 = vmatpush1.msra.mxu0 0.0
      %296 = vmatprep.subr.mxu0 0.0
      %297 = vmatpush1.msra.mxu0 0.0
      %298 = vmatprep.subr.mxu0 0.0
      %299 = vmatpush1.msra.mxu0 0.0
      %300 = vmatprep.subr.mxu0 0.0
      %301 = vmatpush1.msra.mxu0 0.0
      %302 = vmatprep.subr.mxu0 0.0
      %303 = vmatpush1.msra.mxu0 0.0
      %304 = vmatprep.subr.mxu0 0.0
      %305 = vmatpush1.msra.mxu0 0.0
      %306 = vmatprep.subr.mxu0 0.0
      %307 = vmatpush1.msra.mxu0 0.0
      %308 = vmatprep.subr.mxu0 0.0
      %309 = vmatpush1.msra.mxu0 0.0
      %310 = vmatprep.subr.mxu0 0.0
      %311 = vmatpush1.msra.mxu0 0.0
      %312 = vmatprep.subr.mxu0 0.0
      %313 = vmatpush1.msra.mxu0 0.0
      %314 = vmatprep.subr.mxu0 0.0
      %315 = vmatpush1.msra.mxu0 0.0
      %316 = vmatprep.subr.mxu0 0.0
      %317 = vmatpush1.msra.mxu0 0.0
      %318 = vmatprep.subr.mxu0 0.0
      %319 = vmatpush1.msra.mxu0 0.0
      %320 = vmatprep.subr.mxu0 0.0
      %321 = vmatpush1.msra.mxu0 0.0
      %322 = vmatprep.subr.mxu0 0.0
      %323 = vmatpush1.msra.mxu0 0.0
      %324 = vmatprep.mubr.f32.mxu0 0.0
      %325 = vmatmul.mubr.f32.gmra.mrb[0].mxu0 %v249
      %v326 = vpop.f32.mrb[0].mxu0
      %v327 = vadd.f32 %v235, %v326
      %v328 = vpop.f32.mrb[0].mxu0
      %329 = vmatprep.mubr.f32.mxu0 0.0
      %330 = vmatmul.mubr.f32.gmra.mrb[0].mxu0 %v252
      %v331 = vpop.f32.mrb[0].mxu0
      %v332 = vadd.f32 %v240, %v331
      %v333 = vpop.f32.mrb[0].mxu0
      %334 = vmatprep.mubr.f32.mxu0 0.0
      %335 = vmatmul.mubr.f32.gmra.mrb[0].mxu0 %v255
      %v336 = vpop.f32.mrb[0].mxu0
      %v337 = vadd.f32 %v245, %v336
      %v338 = vpop.f32.mrb[0].mxu0
      %339 = vdwg.mxu0
      %v340 = vld [vmem:[%s138 + $0x1] sm:$0xff]
      %v341 = vld [vmem:[%s138 + $0x9] sm:$0xff]
      %v342 = vld [vmem:[%s138 + $0x11] sm:$0xf]
      %s343 = scalar_lea.vmem %s1, 16
      %v344 = vld [vmem:[%s343] sm:$0x3f]
      %v346 = vsel %vm154, %v340, 0
      %v349 = vsel %vm154, %v341, 0
      %v352 = vsel %vm154, %v342, 0
      %v355 = vsel %vm164, %v344, 0
      %357 = vmatprep.subr.mxu0 0.0
      %358 = vmatpush1.msra.mxu0 %v355
      %359 = vmatprep.subr.mxu0 0.0
      %360 = vmatpush1.msra.mxu0 0.0
      %361 = vmatprep.subr.mxu0 0.0
      %362 = vmatpush1.msra.mxu0 0.0
      %363 = vmatprep.subr.mxu0 0.0
      %364 = vmatpush1.msra.mxu0 0.0
      %365 = vmatprep.subr.mxu0 0.0
      %366 = vmatpush1.msra.mxu0 0.0
      %367 = vmatprep.subr.mxu0 0.0
      %368 = vmatpush1.msra.mxu0 0.0
      %369 = vmatprep.subr.mxu0 0.0
      %370 = vmatpush1.msra.mxu0 0.0
      %371 = vmatprep.subr.mxu0 0.0
      %372 = vmatpush1.msra.mxu0 0.0
      %373 = vmatprep.subr.mxu0 0.0
      %374 = vmatpush1.msra.mxu0 0.0
      %375 = vmatprep.subr.mxu0 0.0
      %376 = vmatpush1.msra.mxu0 0.0
      %377 = vmatprep.subr.mxu0 0.0
      %378 = vmatpush1.msra.mxu0 0.0
      %379 = vmatprep.subr.mxu0 0.0
      %380 = vmatpush1.msra.mxu0 0.0
      %381 = vmatprep.subr.mxu0 0.0
      %382 = vmatpush1.msra.mxu0 0.0
      %383 = vmatprep.subr.mxu0 0.0
      %384 = vmatpush1.msra.mxu0 0.0
      %385 = vmatprep.subr.mxu0 0.0
      %386 = vmatpush1.msra.mxu0 0.0
      %387 = vmatprep.subr.mxu0 0.0
      %388 = vmatpush1.msra.mxu0 0.0
      %389 = vmatprep.subr.mxu0 0.0
      %390 = vmatpush1.msra.mxu0 0.0
      %391 = vmatprep.subr.mxu0 0.0
      %392 = vmatpush1.msra.mxu0 0.0
      %393 = vmatprep.subr.mxu0 0.0
      %394 = vmatpush1.msra.mxu0 0.0
      %395 = vmatprep.subr.mxu0 0.0
      %396 = vmatpush1.msra.mxu0 0.0
      %397 = vmatprep.subr.mxu0 0.0
      %398 = vmatpush1.msra.mxu0 0.0
      %399 = vmatprep.subr.mxu0 0.0
      %400 = vmatpush1.msra.mxu0 0.0
      %401 = vmatprep.subr.mxu0 0.0
      %402 = vmatpush1.msra.mxu0 0.0
      %403 = vmatprep.subr.mxu0 0.0
      %404 = vmatpush1.msra.mxu0 0.0
      %405 = vmatprep.subr.mxu0 0.0
      %406 = vmatpush1.msra.mxu0 0.0
      %407 = vmatprep.subr.mxu0 0.0
      %408 = vmatpush1.msra.mxu0 0.0
      %409 = vmatprep.subr.mxu0 0.0
      %410 = vmatpush1.msra.mxu0 0.0
      %411 = vmatprep.subr.mxu0 0.0
      %412 = vmatpush1.msra.mxu0 0.0
      %413 = vmatprep.subr.mxu0 0.0
      %414 = vmatpush1.msra.mxu0 0.0
      %415 = vmatprep.subr.mxu0 0.0
      %416 = vmatpush1.msra.mxu0 0.0
      %417 = vmatprep.subr.mxu0 0.0
      %418 = vmatpush1.msra.mxu0 0.0
      %419 = vmatprep.subr.mxu0 0.0
      %420 = vmatpush1.msra.mxu0 0.0
      %421 = vmatprep.mubr.f32.mxu0 0.0
      %422 = vmatmul.mubr.f32.gmra.mrb[0].mxu0 %v346
      %v423 = vpop.f32.mrb[0].mxu0
      %v424 = vadd.f32 0.0, %v423
      %v425 = vpop.f32.mrb[0].mxu0
      %426 = vmatprep.mubr.f32.mxu0 0.0
      %427 = vmatmul.mubr.f32.gmra.mrb[0].mxu0 %v349
      %v428 = vpop.f32.mrb[0].mxu0
      %v429 = vadd.f32 0.0, %v428
      %v430 = vpop.f32.mrb[0].mxu0
      %431 = vmatprep.mubr.f32.mxu0 0.0
      %432 = vmatmul.mubr.f32.gmra.mrb[0].mxu0 %v352
      %v433 = vpop.f32.mrb[0].mxu0
      %v434 = vadd.f32 0.0, %v433
      %v435 = vpop.f32.mrb[0].mxu0
      %436 = vdwg.mxu0
      %v437 = vadd.f32 %v327, %v424
      %v438 = vadd.f32 %v332, %v429
      %v439 = vadd.f32 %v337, %v434
      %v440 = vld [vmem:[%s148 + $0x1] sm:$0xff]
      %v441 = vld [vmem:[%s148 + $0x9] sm:$0xff]
      %v442 = vld [vmem:[%s148 + $0x11] sm:$0xf]
      %s443 = scalar_lea.vmem %s1, 24
      %v444 = vld [vmem:[%s443] sm:$0x3f]
      %v446 = vsel %vm154, %v440, 0
      %v449 = vsel %vm154, %v441, 0
      %v452 = vsel %vm154, %v442, 0
      %v455 = vsel %vm164, %v444, 0
      %457 = vmatprep.subr.mxu0 0.0
      %458 = vmatpush1.msra.mxu0 %v455
      %459 = vmatprep.subr.mxu0 0.0
      %460 = vmatpush1.msra.mxu0 0.0
      %461 = vmatprep.subr.mxu0 0.0
      %462 = vmatpush1.msra.mxu0 0.0
      %463 = vmatprep.subr.mxu0 0.0
      %464 = vmatpush1.msra.mxu0 0.0
      %465 = vmatprep.subr.mxu0 0.0
      %466 = vmatpush1.msra.mxu0 0.0
      %467 = vmatprep.subr.mxu0 0.0
      %468 = vmatpush1.msra.mxu0 0.0
      %469 = vmatprep.subr.mxu0 0.0
      %470 = vmatpush1.msra.mxu0 0.0
      %471 = vmatprep.subr.mxu0 0.0
      %472 = vmatpush1.msra.mxu0 0.0
      %473 = vmatprep.subr.mxu0 0.0
      %474 = vmatpush1.msra.mxu0 0.0
      %475 = vmatprep.subr.mxu0 0.0
      %476 = vmatpush1.msra.mxu0 0.0
      %477 = vmatprep.subr.mxu0 0.0
      %478 = vmatpush1.msra.mxu0 0.0
      %479 = vmatprep.subr.mxu0 0.0
      %480 = vmatpush1.msra.mxu0 0.0
      %481 = vmatprep.subr.mxu0 0.0
      %482 = vmatpush1.msra.mxu0 0.0
      %483 = vmatprep.subr.mxu0 0.0
      %484 = vmatpush1.msra.mxu0 0.0
      %485 = vmatprep.subr.mxu0 0.0
      %486 = vmatpush1.msra.mxu0 0.0
      %487 = vmatprep.subr.mxu0 0.0
      %488 = vmatpush1.msra.mxu0 0.0
      %489 = vmatprep.subr.mxu0 0.0
      %490 = vmatpush1.msra.mxu0 0.0
      %491 = vmatprep.subr.mxu0 0.0
      %492 = vmatpush1.msra.mxu0 0.0
      %493 = vmatprep.subr.mxu0 0.0
      %494 = vmatpush1.msra.mxu0 0.0
      %495 = vmatprep.subr.mxu0 0.0
      %496 = vmatpush1.msra.mxu0 0.0
      %497 = vmatprep.subr.mxu0 0.0
      %498 = vmatpush1.msra.mxu0 0.0
      %499 = vmatprep.subr.mxu0 0.0
      %500 = vmatpush1.msra.mxu0 0.0
      %501 = vmatprep.subr.mxu0 0.0
      %502 = vmatpush1.msra.mxu0 0.0
      %503 = vmatprep.subr.mxu0 0.0
      %504 = vmatpush1.msra.mxu0 0.0
      %505 = vmatprep.subr.mxu0 0.0
      %506 = vmatpush1.msra.mxu0 0.0
      %507 = vmatprep.subr.mxu0 0.0
      %508 = vmatpush1.msra.mxu0 0.0
      %509 = vmatprep.subr.mxu0 0.0
      %510 = vmatpush1.msra.mxu0 0.0
      %511 = vmatprep.subr.mxu0 0.0
      %512 = vmatpush1.msra.mxu0 0.0
      %513 = vmatprep.subr.mxu0 0.0
      %514 = vmatpush1.msra.mxu0 0.0
      %515 = vmatprep.subr.mxu0 0.0
      %516 = vmatpush1.msra.mxu0 0.0
      %517 = vmatprep.subr.mxu0 0.0
      %518 = vmatpush1.msra.mxu0 0.0
      %519 = vmatprep.subr.mxu0 0.0
      %520 = vmatpush1.msra.mxu0 0.0
      %521 = vmatprep.mubr.f32.mxu0 0.0
      %522 = vmatmul.mubr.f32.gmra.mrb[0].mxu0 %v446
      %v523 = vpop.f32.mrb[0].mxu0
      %v524 = vadd.f32 0.0, %v523
      %v525 = vpop.f32.mrb[0].mxu0
      %526 = vmatprep.mubr.f32.mxu0 0.0
      %527 = vmatmul.mubr.f32.gmra.mrb[0].mxu0 %v449
      %v528 = vpop.f32.mrb[0].mxu0
      %v529 = vadd.f32 0.0, %v528
      %v530 = vpop.f32.mrb[0].mxu0
      %531 = vmatprep.mubr.f32.mxu0 0.0
      %532 = vmatmul.mubr.f32.gmra.mrb[0].mxu0 %v452
      %v533 = vpop.f32.mrb[0].mxu0
      %v534 = vadd.f32 0.0, %v533
      %v535 = vpop.f32.mrb[0].mxu0
      %536 = vdwg.mxu0
      %v537 = vadd.f32 %v437, %v524
      %v538 = vadd.f32 %v438, %v529
      %v539 = vadd.f32 %v439, %v534
      %s540 = scalar_lea.vmem %s138, 64
      %v541 = vld [vmem:[%s540] sm:$0xff]
      %v542 = vld [vmem:[%s540 + $0x8] sm:$0xff]
      %v543 = vld [vmem:[%s540 + $0x10] sm:$0xf]
      %s544 = scalar_lea.vmem %s1, 32
      %v545 = vld [vmem:[%s544] sm:$0x3f]
      %v547 = vsel %vm154, %v541, 0
      %v550 = vsel %vm154, %v542, 0
      %v553 = vsel %vm154, %v543, 0
      %v556 = vsel %vm164, %v545, 0
      %558 = vmatprep.subr.mxu0 0.0
      %559 = vmatpush1.msra.mxu0 %v556
      %560 = vmatprep.subr.mxu0 0.0
      %561 = vmatpush1.msra.mxu0 0.0
      %562 = vmatprep.subr.mxu0 0.0
      %563 = vmatpush1.msra.mxu0 0.0
      %564 = vmatprep.subr.mxu0 0.0
      %565 = vmatpush1.msra.mxu0 0.0
      %566 = vmatprep.subr.mxu0 0.0
      %567 = vmatpush1.msra.mxu0 0.0
      %568 = vmatprep.subr.mxu0 0.0
      %569 = vmatpush1.msra.mxu0 0.0
      %570 = vmatprep.subr.mxu0 0.0
      %571 = vmatpush1.msra.mxu0 0.0
      %572 = vmatprep.subr.mxu0 0.0
      %573 = vmatpush1.msra.mxu0 0.0
      %574 = vmatprep.subr.mxu0 0.0
      %575 = vmatpush1.msra.mxu0 0.0
      %576 = vmatprep.subr.mxu0 0.0
      %577 = vmatpush1.msra.mxu0 0.0
      %578 = vmatprep.subr.mxu0 0.0
      %579 = vmatpush1.msra.mxu0 0.0
      %580 = vmatprep.subr.mxu0 0.0
      %581 = vmatpush1.msra.mxu0 0.0
      %582 = vmatprep.subr.mxu0 0.0
      %583 = vmatpush1.msra.mxu0 0.0
      %584 = vmatprep.subr.mxu0 0.0
      %585 = vmatpush1.msra.mxu0 0.0
      %586 = vmatprep.subr.mxu0 0.0
      %587 = vmatpush1.msra.mxu0 0.0
      %588 = vmatprep.subr.mxu0 0.0
      %589 = vmatpush1.msra.mxu0 0.0
      %590 = vmatprep.subr.mxu0 0.0
      %591 = vmatpush1.msra.mxu0 0.0
      %592 = vmatprep.subr.mxu0 0.0
      %593 = vmatpush1.msra.mxu0 0.0
      %594 = vmatprep.subr.mxu0 0.0
      %595 = vmatpush1.msra.mxu0 0.0
      %596 = vmatprep.subr.mxu0 0.0
      %597 = vmatpush1.msra.mxu0 0.0
      %598 = vmatprep.subr.mxu0 0.0
      %599 = vmatpush1.msra.mxu0 0.0
      %600 = vmatprep.subr.mxu0 0.0
      %601 = vmatpush1.msra.mxu0 0.0
      %602 = vmatprep.subr.mxu0 0.0
      %603 = vmatpush1.msra.mxu0 0.0
      %604 = vmatprep.subr.mxu0 0.0
      %605 = vmatpush1.msra.mxu0 0.0
      %606 = vmatprep.subr.mxu0 0.0
      %607 = vmatpush1.msra.mxu0 0.0
      %608 = vmatprep.subr.mxu0 0.0
      %609 = vmatpush1.msra.mxu0 0.0
      %610 = vmatprep.subr.mxu0 0.0
      %611 = vmatpush1.msra.mxu0 0.0
      %612 = vmatprep.subr.mxu0 0.0
      %613 = vmatpush1.msra.mxu0 0.0
      %614 = vmatprep.subr.mxu0 0.0
      %615 = vmatpush1.msra.mxu0 0.0
      %616 = vmatprep.subr.mxu0 0.0
      %617 = vmatpush1.msra.mxu0 0.0
      %618 = vmatprep.subr.mxu0 0.0
      %619 = vmatpush1.msra.mxu0 0.0
      %620 = vmatprep.subr.mxu0 0.0
      %621 = vmatpush1.msra.mxu0 0.0
      %622 = vmatprep.mubr.f32.mxu0 0.0
      %623 = vmatmul.mubr.f32.gmra.mrb[0].mxu0 %v547
      %v624 = vpop.f32.mrb[0].mxu0
      %v625 = vadd.f32 0.0, %v624
      %v626 = vpop.f32.mrb[0].mxu0
      %627 = vmatprep.mubr.f32.mxu0 0.0
      %628 = vmatmul.mubr.f32.gmra.mrb[0].mxu0 %v550
      %v629 = vpop.f32.mrb[0].mxu0
      %v630 = vadd.f32 0.0, %v629
      %v631 = vpop.f32.mrb[0].mxu0
      %632 = vmatprep.mubr.f32.mxu0 0.0
      %633 = vmatmul.mubr.f32.gmra.mrb[0].mxu0 %v553
      %v634 = vpop.f32.mrb[0].mxu0
      %v635 = vadd.f32 0.0, %v634
      %v636 = vpop.f32.mrb[0].mxu0
      %637 = vdwg.mxu0
      %v638 = vadd.f32 %v537, %v625
      %v639 = vadd.f32 %v538, %v630
      %v640 = vadd.f32 %v539, %v635
      %s641 = scalar_lea.vmem %s138, 96
      %v642 = vld [vmem:[%s641] sm:$0xff]
      %v643 = vld [vmem:[%s641 + $0x8] sm:$0xff]
      %v644 = vld [vmem:[%s641 + $0x10] sm:$0xf]
      %s645 = scalar_lea.vmem %s1, 40
      %v646 = vld [vmem:[%s645] sm:$0x3f]
      %v648 = vsel %vm154, %v642, 0
      %v651 = vsel %vm154, %v643, 0
      %v654 = vsel %vm154, %v644, 0
      %v657 = vsel %vm164, %v646, 0
      %659 = vmatprep.subr.mxu0 0.0
      %660 = vmatpush1.msra.mxu0 %v657
      %661 = vmatprep.subr.mxu0 0.0
      %662 = vmatpush1.msra.mxu0 0.0
      %663 = vmatprep.subr.mxu0 0.0
      %664 = vmatpush1.msra.mxu0 0.0
      %665 = vmatprep.subr.mxu0 0.0
      %666 = vmatpush1.msra.mxu0 0.0
      %667 = vmatprep.subr.mxu0 0.0
      %668 = vmatpush1.msra.mxu0 0.0
      %669 = vmatprep.subr.mxu0 0.0
      %670 = vmatpush1.msra.mxu0 0.0
      %671 = vmatprep.subr.mxu0 0.0
      %672 = vmatpush1.msra.mxu0 0.0
      %673 = vmatprep.subr.mxu0 0.0
      %674 = vmatpush1.msra.mxu0 0.0
      %675 = vmatprep.subr.mxu0 0.0
      %676 = vmatpush1.msra.mxu0 0.0
      %677 = vmatprep.subr.mxu0 0.0
      %678 = vmatpush1.msra.mxu0 0.0
      %679 = vmatprep.subr.mxu0 0.0
      %680 = vmatpush1.msra.mxu0 0.0
      %681 = vmatprep.subr.mxu0 0.0
      %682 = vmatpush1.msra.mxu0 0.0
      %683 = vmatprep.subr.mxu0 0.0
      %684 = vmatpush1.msra.mxu0 0.0
      %685 = vmatprep.subr.mxu0 0.0
      %686 = vmatpush1.msra.mxu0 0.0
      %687 = vmatprep.subr.mxu0 0.0
      %688 = vmatpush1.msra.mxu0 0.0
      %689 = vmatprep.subr.mxu0 0.0
      %690 = vmatpush1.msra.mxu0 0.0
      %691 = vmatprep.subr.mxu0 0.0
      %692 = vmatpush1.msra.mxu0 0.0
      %693 = vmatprep.subr.mxu0 0.0
      %694 = vmatpush1.msra.mxu0 0.0
      %695 = vmatprep.subr.mxu0 0.0
      %696 = vmatpush1.msra.mxu0 0.0
      %697 = vmatprep.subr.mxu0 0.0
      %698 = vmatpush1.msra.mxu0 0.0
      %699 = vmatprep.subr.mxu0 0.0
      %700 = vmatpush1.msra.mxu0 0.0
      %701 = vmatprep.subr.mxu0 0.0
      %702 = vmatpush1.msra.mxu0 0.0
      %703 = vmatprep.subr.mxu0 0.0
      %704 = vmatpush1.msra.mxu0 0.0
      %705 = vmatprep.subr.mxu0 0.0
      %706 = vmatpush1.msra.mxu0 0.0
      %707 = vmatprep.subr.mxu0 0.0
      %708 = vmatpush1.msra.mxu0 0.0
      %709 = vmatprep.subr.mxu0 0.0
      %710 = vmatpush1.msra.mxu0 0.0
      %711 = vmatprep.subr.mxu0 0.0
      %712 = vmatpush1.msra.mxu0 0.0
      %713 = vmatprep.subr.mxu0 0.0
      %714 = vmatpush1.msra.mxu0 0.0
      %715 = vmatprep.subr.mxu0 0.0
      %716 = vmatpush1.msra.mxu0 0.0
      %717 = vmatprep.subr.mxu0 0.0
      %718 = vmatpush1.msra.mxu0 0.0
      %719 = vmatprep.subr.mxu0 0.0
      %720 = vmatpush1.msra.mxu0 0.0
      %721 = vmatprep.subr.mxu0 0.0
      %722 = vmatpush1.msra.mxu0 0.0
      %723 = vmatprep.mubr.f32.mxu0 0.0
      %724 = vmatmul.mubr.f32.gmra.mrb[0].mxu0 %v648
      %v725 = vpop.f32.mrb[0].mxu0
      %v726 = vadd.f32 0.0, %v725
      %v727 = vpop.f32.mrb[0].mxu0
      %728 = vmatprep.mubr.f32.mxu0 0.0
      %729 = vmatmul.mubr.f32.gmra.mrb[0].mxu0 %v651
      %v730 = vpop.f32.mrb[0].mxu0
      %v731 = vadd.f32 0.0, %v730
      %v732 = vpop.f32.mrb[0].mxu0
      %733 = vmatprep.mubr.f32.mxu0 0.0
      %734 = vmatmul.mubr.f32.gmra.mrb[0].mxu0 %v654
      %v735 = vpop.f32.mrb[0].mxu0
      %v736 = vadd.f32 0.0, %v735
      %v737 = vpop.f32.mrb[0].mxu0
      %738 = vdwg.mxu0
      %v739 = vadd.f32 %v638, %v726
      %v740 = vadd.f32 %v639, %v731
      %v741 = vadd.f32 %v640, %v736
      %v742 = vld [vmem:[%s540 + $0x1] sm:$0xff]
      %v743 = vld [vmem:[%s540 + $0x9] sm:$0xff]
      %v744 = vld [vmem:[%s540 + $0x11] sm:$0xf]
      %s745 = scalar_lea.vmem %s1, 48
      %v746 = vld [vmem:[%s745] sm:$0x3f]
      %v748 = vsel %vm154, %v742, 0
      %v751 = vsel %vm154, %v743, 0
      %v754 = vsel %vm154, %v744, 0
      %v757 = vsel %vm164, %v746, 0
      %759 = vmatprep.subr.mxu0 0.0
      %760 = vmatpush1.msra.mxu0 %v757
      %761 = vmatprep.subr.mxu0 0.0
      %762 = vmatpush1.msra.mxu0 0.0
      %763 = vmatprep.subr.mxu0 0.0
      %764 = vmatpush1.msra.mxu0 0.0
      %765 = vmatprep.subr.mxu0 0.0
      %766 = vmatpush1.msra.mxu0 0.0
      %767 = vmatprep.subr.mxu0 0.0
      %768 = vmatpush1.msra.mxu0 0.0
      %769 = vmatprep.subr.mxu0 0.0
      %770 = vmatpush1.msra.mxu0 0.0
      %771 = vmatprep.subr.mxu0 0.0
      %772 = vmatpush1.msra.mxu0 0.0
      %773 = vmatprep.subr.mxu0 0.0
      %774 = vmatpush1.msra.mxu0 0.0
      %775 = vmatprep.subr.mxu0 0.0
      %776 = vmatpush1.msra.mxu0 0.0
      %777 = vmatprep.subr.mxu0 0.0
      %778 = vmatpush1.msra.mxu0 0.0
      %779 = vmatprep.subr.mxu0 0.0
      %780 = vmatpush1.msra.mxu0 0.0
      %781 = vmatprep.subr.mxu0 0.0
      %782 = vmatpush1.msra.mxu0 0.0
      %783 = vmatprep.subr.mxu0 0.0
      %784 = vmatpush1.msra.mxu0 0.0
      %785 = vmatprep.subr.mxu0 0.0
      %786 = vmatpush1.msra.mxu0 0.0
      %787 = vmatprep.subr.mxu0 0.0
      %788 = vmatpush1.msra.mxu0 0.0
      %789 = vmatprep.subr.mxu0 0.0
      %790 = vmatpush1.msra.mxu0 0.0
      %791 = vmatprep.subr.mxu0 0.0
      %792 = vmatpush1.msra.mxu0 0.0
      %793 = vmatprep.subr.mxu0 0.0
      %794 = vmatpush1.msra.mxu0 0.0
      %795 = vmatprep.subr.mxu0 0.0
      %796 = vmatpush1.msra.mxu0 0.0
      %797 = vmatprep.subr.mxu0 0.0
      %798 = vmatpush1.msra.mxu0 0.0
      %799 = vmatprep.subr.mxu0 0.0
      %800 = vmatpush1.msra.mxu0 0.0
      %801 = vmatprep.subr.mxu0 0.0
      %802 = vmatpush1.msra.mxu0 0.0
      %803 = vmatprep.subr.mxu0 0.0
      %804 = vmatpush1.msra.mxu0 0.0
      %805 = vmatprep.subr.mxu0 0.0
      %806 = vmatpush1.msra.mxu0 0.0
      %807 = vmatprep.subr.mxu0 0.0
      %808 = vmatpush1.msra.mxu0 0.0
      %809 = vmatprep.subr.mxu0 0.0
      %810 = vmatpush1.msra.mxu0 0.0
      %811 = vmatprep.subr.mxu0 0.0
      %812 = vmatpush1.msra.mxu0 0.0
      %813 = vmatprep.subr.mxu0 0.0
      %814 = vmatpush1.msra.mxu0 0.0
      %815 = vmatprep.subr.mxu0 0.0
      %816 = vmatpush1.msra.mxu0 0.0
      %817 = vmatprep.subr.mxu0 0.0
      %818 = vmatpush1.msra.mxu0 0.0
      %819 = vmatprep.subr.mxu0 0.0
      %820 = vmatpush1.msra.mxu0 0.0
      %821 = vmatprep.subr.mxu0 0.0
      %822 = vmatpush1.msra.mxu0 0.0
      %823 = vmatprep.mubr.f32.mxu0 0.0
      %824 = vmatmul.mubr.f32.gmra.mrb[0].mxu0 %v748
      %v825 = vpop.f32.mrb[0].mxu0
      %v826 = vadd.f32 0.0, %v825
      %v827 = vpop.f32.mrb[0].mxu0
      %828 = vmatprep.mubr.f32.mxu0 0.0
      %829 = vmatmul.mubr.f32.gmra.mrb[0].mxu0 %v751
      %v830 = vpop.f32.mrb[0].mxu0
      %v831 = vadd.f32 0.0, %v830
      %v832 = vpop.f32.mrb[0].mxu0
      %833 = vmatprep.mubr.f32.mxu0 0.0
      %834 = vmatmul.mubr.f32.gmra.mrb[0].mxu0 %v754
      %v835 = vpop.f32.mrb[0].mxu0
      %v836 = vadd.f32 0.0, %v835
      %v837 = vpop.f32.mrb[0].mxu0
      %838 = vdwg.mxu0
      %v839 = vadd.f32 %v739, %v826
      %v840 = vadd.f32 %v740, %v831
      %v841 = vadd.f32 %v741, %v836
      %v842 = vld [vmem:[%s641 + $0x1] sm:$0xff]
      %v843 = vld [vmem:[%s641 + $0x9] sm:$0xff]
      %v844 = vld [vmem:[%s641 + $0x11] sm:$0xf]
      %s845 = scalar_lea.vmem %s1, 56
      %v846 = vld [vmem:[%s845] sm:$0x3f]
      %v848 = vsel %vm154, %v842, 0
      %v851 = vsel %vm154, %v843, 0
      %v854 = vsel %vm154, %v844, 0
      %v857 = vsel %vm164, %v846, 0
      %859 = vmatprep.subr.mxu0 0.0
      %860 = vmatpush1.msra.mxu0 %v857
      %861 = vmatprep.subr.mxu0 0.0
      %862 = vmatpush1.msra.mxu0 0.0
      %863 = vmatprep.subr.mxu0 0.0
      %864 = vmatpush1.msra.mxu0 0.0
      %865 = vmatprep.subr.mxu0 0.0
      %866 = vmatpush1.msra.mxu0 0.0
      %867 = vmatprep.subr.mxu0 0.0
      %868 = vmatpush1.msra.mxu0 0.0
      %869 = vmatprep.subr.mxu0 0.0
      %870 = vmatpush1.msra.mxu0 0.0
      %871 = vmatprep.subr.mxu0 0.0
      %872 = vmatpush1.msra.mxu0 0.0
      %873 = vmatprep.subr.mxu0 0.0
      %874 = vmatpush1.msra.mxu0 0.0
      %875 = vmatprep.subr.mxu0 0.0
      %876 = vmatpush1.msra.mxu0 0.0
      %877 = vmatprep.subr.mxu0 0.0
      %878 = vmatpush1.msra.mxu0 0.0
      %879 = vmatprep.subr.mxu0 0.0
      %880 = vmatpush1.msra.mxu0 0.0
      %881 = vmatprep.subr.mxu0 0.0
      %882 = vmatpush1.msra.mxu0 0.0
      %883 = vmatprep.subr.mxu0 0.0
      %884 = vmatpush1.msra.mxu0 0.0
      %885 = vmatprep.subr.mxu0 0.0
      %886 = vmatpush1.msra.mxu0 0.0
      %887 = vmatprep.subr.mxu0 0.0
      %888 = vmatpush1.msra.mxu0 0.0
      %889 = vmatprep.subr.mxu0 0.0
      %890 = vmatpush1.msra.mxu0 0.0
      %891 = vmatprep.subr.mxu0 0.0
      %892 = vmatpush1.msra.mxu0 0.0
      %893 = vmatprep.subr.mxu0 0.0
      %894 = vmatpush1.msra.mxu0 0.0
      %895 = vmatprep.subr.mxu0 0.0
      %896 = vmatpush1.msra.mxu0 0.0
      %897 = vmatprep.subr.mxu0 0.0
      %898 = vmatpush1.msra.mxu0 0.0
      %899 = vmatprep.subr.mxu0 0.0
      %900 = vmatpush1.msra.mxu0 0.0
      %901 = vmatprep.subr.mxu0 0.0
      %902 = vmatpush1.msra.mxu0 0.0
      %903 = vmatprep.subr.mxu0 0.0
      %904 = vmatpush1.msra.mxu0 0.0
      %905 = vmatprep.subr.mxu0 0.0
      %906 = vmatpush1.msra.mxu0 0.0
      %907 = vmatprep.subr.mxu0 0.0
      %908 = vmatpush1.msra.mxu0 0.0
      %909 = vmatprep.subr.mxu0 0.0
      %910 = vmatpush1.msra.mxu0 0.0
      %911 = vmatprep.subr.mxu0 0.0
      %912 = vmatpush1.msra.mxu0 0.0
      %913 = vmatprep.subr.mxu0 0.0
      %914 = vmatpush1.msra.mxu0 0.0
      %915 = vmatprep.subr.mxu0 0.0
      %916 = vmatpush1.msra.mxu0 0.0
      %917 = vmatprep.subr.mxu0 0.0
      %918 = vmatpush1.msra.mxu0 0.0
      %919 = vmatprep.subr.mxu0 0.0
      %920 = vmatpush1.msra.mxu0 0.0
      %921 = vmatprep.subr.mxu0 0.0
      %922 = vmatpush1.msra.mxu0 0.0
      %923 = vmatprep.mubr.f32.mxu0 0.0
      %924 = vmatmul.mubr.f32.gmra.mrb[0].mxu0 %v848
      %v925 = vpop.f32.mrb[0].mxu0
      %v926 = vadd.f32 0.0, %v925
      %v927 = vpop.f32.mrb[0].mxu0
      %928 = vmatprep.mubr.f32.mxu0 0.0
      %929 = vmatmul.mubr.f32.gmra.mrb[0].mxu0 %v851
      %v930 = vpop.f32.mrb[0].mxu0
      %v931 = vadd.f32 0.0, %v930
      %v932 = vpop.f32.mrb[0].mxu0
      %933 = vmatprep.mubr.f32.mxu0 0.0
      %934 = vmatmul.mubr.f32.gmra.mrb[0].mxu0 %v854
      %v935 = vpop.f32.mrb[0].mxu0
      %v936 = vadd.f32 0.0, %v935
      %v937 = vpop.f32.mrb[0].mxu0
      %938 = vdwg.mxu0
      %v939 = vadd.f32 %v839, %v926
      %v940 = vadd.f32 %v840, %v931
      %v941 = vadd.f32 %v841, %v936
      %v942 = vld [vmem:[%s138 + $0x5] sm:$0xff]
      %v943 = vld [vmem:[%s138 + $0xd] sm:$0xff]
      %v944 = vld [vmem:[%s138 + $0x15] sm:$0xf]
      %s945 = scalar_lea.vmem %s1, 64
      %v946 = vld [vmem:[%s945] sm:$0x3f]
      %v948 = vsel %vm154, %v942, 0
      %v951 = vsel %vm154, %v943, 0
      %v954 = vsel %vm154, %v944, 0
      %v957 = vsel %vm164, %v946, 0
      %959 = vmatprep.subr.mxu0 0.0
      %960 = vmatpush1.msra.mxu0 %v957
      %961 = vmatprep.subr.mxu0 0.0
      %962 = vmatpush1.msra.mxu0 0.0
      %963 = vmatprep.subr.mxu0 0.0
      %964 = vmatpush1.msra.mxu0 0.0
      %965 = vmatprep.subr.mxu0 0.0
      %966 = vmatpush1.msra.mxu0 0.0
      %967 = vmatprep.subr.mxu0 0.0
      %968 = vmatpush1.msra.mxu0 0.0
      %969 = vmatprep.subr.mxu0 0.0
      %970 = vmatpush1.msra.mxu0 0.0
      %971 = vmatprep.subr.mxu0 0.0
      %972 = vmatpush1.msra.mxu0 0.0
      %973 = vmatprep.subr.mxu0 0.0
      %974 = vmatpush1.msra.mxu0 0.0
      %975 = vmatprep.subr.mxu0 0.0
      %976 = vmatpush1.msra.mxu0 0.0
      %977 = vmatprep.subr.mxu0 0.0
      %978 = vmatpush1.msra.mxu0 0.0
      %979 = vmatprep.subr.mxu0 0.0
      %980 = vmatpush1.msra.mxu0 0.0
      %981 = vmatprep.subr.mxu0 0.0
      %982 = vmatpush1.msra.mxu0 0.0
      %983 = vmatprep.subr.mxu0 0.0
      %984 = vmatpush1.msra.mxu0 0.0
      %985 = vmatprep.subr.mxu0 0.0
      %986 = vmatpush1.msra.mxu0 0.0
      %987 = vmatprep.subr.mxu0 0.0
      %988 = vmatpush1.msra.mxu0 0.0
      %989 = vmatprep.subr.mxu0 0.0
      %990 = vmatpush1.msra.mxu0 0.0
      %991 = vmatprep.subr.mxu0 0.0
      %992 = vmatpush1.msra.mxu0 0.0
      %993 = vmatprep.subr.mxu0 0.0
      %994 = vmatpush1.msra.mxu0 0.0
      %995 = vmatprep.subr.mxu0 0.0
      %996 = vmatpush1.msra.mxu0 0.0
      %997 = vmatprep.subr.mxu0 0.0
      %998 = vmatpush1.msra.mxu0 0.0
      %999 = vmatprep.subr.mxu0 0.0
      %1000 = vmatpush1.msra.mxu0 0.0
      %1001 = vmatprep.subr.mxu0 0.0
      %1002 = vmatpush1.msra.mxu0 0.0
      %1003 = vmatprep.subr.mxu0 0.0
      %1004 = vmatpush1.msra.mxu0 0.0
      %1005 = vmatprep.subr.mxu0 0.0
      %1006 = vmatpush1.msra.mxu0 0.0
      %1007 = vmatprep.subr.mxu0 0.0
      %1008 = vmatpush1.msra.mxu0 0.0
      %1009 = vmatprep.subr.mxu0 0.0
      %1010 = vmatpush1.msra.mxu0 0.0
      %1011 = vmatprep.subr.mxu0 0.0
      %1012 = vmatpush1.msra.mxu0 0.0
      %1013 = vmatprep.subr.mxu0 0.0
      %1014 = vmatpush1.msra.mxu0 0.0
      %1015 = vmatprep.subr.mxu0 0.0
      %1016 = vmatpush1.msra.mxu0 0.0
      %1017 = vmatprep.subr.mxu0 0.0
      %1018 = vmatpush1.msra.mxu0 0.0
      %1019 = vmatprep.subr.mxu0 0.0
      %1020 = vmatpush1.msra.mxu0 0.0
      %1021 = vmatprep.subr.mxu0 0.0
      %1022 = vmatpush1.msra.mxu0 0.0
      %1023 = vmatprep.mubr.f32.mxu0 0.0
      %1024 = vmatmul.mubr.f32.gmra.mrb[0].mxu0 %v948
      %v1025 = vpop.f32.mrb[0].mxu0
      %v1026 = vadd.f32 0.0, %v1025
      %v1027 = vpop.f32.mrb[0].mxu0
      %1028 = vmatprep.mubr.f32.mxu0 0.0
      %1029 = vmatmul.mubr.f32.gmra.mrb[0].mxu0 %v951
      %v1030 = vpop.f32.mrb[0].mxu0
      %v1031 = vadd.f32 0.0, %v1030
      %v1032 = vpop.f32.mrb[0].mxu0
      %1033 = vmatprep.mubr.f32.mxu0 0.0
      %1034 = vmatmul.mubr.f32.gmra.mrb[0].mxu0 %v954
      %v1035 = vpop.f32.mrb[0].mxu0
      %v1036 = vadd.f32 0.0, %v1035
      %v1037 = vpop.f32.mrb[0].mxu0
      %1038 = vdwg.mxu0
      %v1039 = vadd.f32 %v939, %v1026
      %v1040 = vadd.f32 %v940, %v1031
      %v1041 = vadd.f32 %v941, %v1036
      %v1042 = vld [vmem:[%s148 + $0x5] sm:$0xff]
      %v1043 = vld [vmem:[%s148 + $0xd] sm:$0xff]
      %v1044 = vld [vmem:[%s148 + $0x15] sm:$0xf]
      %s1045 = scalar_lea.vmem %s1, 72
      %v1046 = vld [vmem:[%s1045] sm:$0x3f]
      %v1048 = vsel %vm154, %v1042, 0
      %v1051 = vsel %vm154, %v1043, 0
      %v1054 = vsel %vm154, %v1044, 0
      %v1057 = vsel %vm164, %v1046, 0
      %1059 = vmatprep.subr.mxu0 0.0
      %1060 = vmatpush1.msra.mxu0 %v1057
      %1061 = vmatprep.subr.mxu0 0.0
      %1062 = vmatpush1.msra.mxu0 0.0
      %1063 = vmatprep.subr.mxu0 0.0
      %1064 = vmatpush1.msra.mxu0 0.0
      %1065 = vmatprep.subr.mxu0 0.0
      %1066 = vmatpush1.msra.mxu0 0.0
      %1067 = vmatprep.subr.mxu0 0.0
      %1068 = vmatpush1.msra.mxu0 0.0
      %1069 = vmatprep.subr.mxu0 0.0
      %1070 = vmatpush1.msra.mxu0 0.0
      %1071 = vmatprep.subr.mxu0 0.0
      %1072 = vmatpush1.msra.mxu0 0.0
      %1073 = vmatprep.subr.mxu0 0.0
      %1074 = vmatpush1.msra.mxu0 0.0
      %1075 = vmatprep.subr.mxu0 0.0
      %1076 = vmatpush1.msra.mxu0 0.0
      %1077 = vmatprep.subr.mxu0 0.0
      %1078 = vmatpush1.msra.mxu0 0.0
      %1079 = vmatprep.subr.mxu0 0.0
      %1080 = vmatpush1.msra.mxu0 0.0
      %1081 = vmatprep.subr.mxu0 0.0
      %1082 = vmatpush1.msra.mxu0 0.0
      %1083 = vmatprep.subr.mxu0 0.0
      %1084 = vmatpush1.msra.mxu0 0.0
      %1085 = vmatprep.subr.mxu0 0.0
      %1086 = vmatpush1.msra.mxu0 0.0
      %1087 = vmatprep.subr.mxu0 0.0
      %1088 = vmatpush1.msra.mxu0 0.0
      %1089 = vmatprep.subr.mxu0 0.0
      %1090 = vmatpush1.msra.mxu0 0.0
      %1091 = vmatprep.subr.mxu0 0.0
      %1092 = vmatpush1.msra.mxu0 0.0
      %1093 = vmatprep.subr.mxu0 0.0
      %1094 = vmatpush1.msra.mxu0 0.0
      %1095 = vmatprep.subr.mxu0 0.0
      %1096 = vmatpush1.msra.mxu0 0.0
      %1097 = vmatprep.subr.mxu0 0.0
      %1098 = vmatpush1.msra.mxu0 0.0
      %1099 = vmatprep.subr.mxu0 0.0
      %1100 = vmatpush1.msra.mxu0 0.0
      %1101 = vmatprep.subr.mxu0 0.0
      %1102 = vmatpush1.msra.mxu0 0.0
      %1103 = vmatprep.subr.mxu0 0.0
      %1104 = vmatpush1.msra.mxu0 0.0
      %1105 = vmatprep.subr.mxu0 0.0
      %1106 = vmatpush1.msra.mxu0 0.0
      %1107 = vmatprep.subr.mxu0 0.0
      %1108 = vmatpush1.msra.mxu0 0.0
      %1109 = vmatprep.subr.mxu0 0.0
      %1110 = vmatpush1.msra.mxu0 0.0
      %1111 = vmatprep.subr.mxu0 0.0
      %1112 = vmatpush1.msra.mxu0 0.0
      %1113 = vmatprep.subr.mxu0 0.0
      %1114 = vmatpush1.msra.mxu0 0.0
      %1115 = vmatprep.subr.mxu0 0.0
      %1116 = vmatpush1.msra.mxu0 0.0
      %1117 = vmatprep.subr.mxu0 0.0
      %1118 = vmatpush1.msra.mxu0 0.0
      %1119 = vmatprep.subr.mxu0 0.0
      %1120 = vmatpush1.msra.mxu0 0.0
      %1121 = vmatprep.subr.mxu0 0.0
      %1122 = vmatpush1.msra.mxu0 0.0
      %1123 = vmatprep.mubr.f32.mxu0 0.0
      %1124 = vmatmul.mubr.f32.gmra.mrb[0].mxu0 %v1048
      %v1125 = vpop.f32.mrb[0].mxu0
      %v1126 = vadd.f32 0.0, %v1125
      %v1127 = vpop.f32.mrb[0].mxu0
      %1128 = vmatprep.mubr.f32.mxu0 0.0
      %1129 = vmatmul.mubr.f32.gmra.mrb[0].mxu0 %v1051
      %v1130 = vpop.f32.mrb[0].mxu0
      %v1131 = vadd.f32 0.0, %v1130
      %v1132 = vpop.f32.mrb[0].mxu0
      %1133 = vmatprep.mubr.f32.mxu0 0.0
      %1134 = vmatmul.mubr.f32.gmra.mrb[0].mxu0 %v1054
      %v1135 = vpop.f32.mrb[0].mxu0
      %v1136 = vadd.f32 0.0, %v1135
      %v1137 = vpop.f32.mrb[0].mxu0
      %1138 = vdwg.mxu0
      %v1139 = vadd.f32 %v1039, %v1126
      %v1140 = vadd.f32 %v1040, %v1131
      %v1141 = vadd.f32 %v1041, %v1136
      %v1142 = vld [vmem:[%s138 + $0x6] sm:$0xff]
      %v1143 = vld [vmem:[%s138 + $0xe] sm:$0xff]
      %v1144 = vld [vmem:[%s138 + $0x16] sm:$0xf]
      %s1145 = scalar_lea.vmem %s1, 80
      %v1146 = vld [vmem:[%s1145] sm:$0x3f]
      %v1148 = vsel %vm154, %v1142, 0
      %v1151 = vsel %vm154, %v1143, 0
      %v1154 = vsel %vm154, %v1144, 0
      %v1157 = vsel %vm164, %v1146, 0
      %1159 = vmatprep.subr.mxu0 0.0
      %1160 = vmatpush1.msra.mxu0 %v1157
      %1161 = vmatprep.subr.mxu0 0.0
      %1162 = vmatpush1.msra.mxu0 0.0
      %1163 = vmatprep.subr.mxu0 0.0
      %1164 = vmatpush1.msra.mxu0 0.0
      %1165 = vmatprep.subr.mxu0 0.0
      %1166 = vmatpush1.msra.mxu0 0.0
      %1167 = vmatprep.subr.mxu0 0.0
      %1168 = vmatpush1.msra.mxu0 0.0
      %1169 = vmatprep.subr.mxu0 0.0
      %1170 = vmatpush1.msra.mxu0 0.0
      %1171 = vmatprep.subr.mxu0 0.0
      %1172 = vmatpush1.msra.mxu0 0.0
      %1173 = vmatprep.subr.mxu0 0.0
      %1174 = vmatpush1.msra.mxu0 0.0
      %1175 = vmatprep.subr.mxu0 0.0
      %1176 = vmatpush1.msra.mxu0 0.0
      %1177 = vmatprep.subr.mxu0 0.0
      %1178 = vmatpush1.msra.mxu0 0.0
      %1179 = vmatprep.subr.mxu0 0.0
      %1180 = vmatpush1.msra.mxu0 0.0
      %1181 = vmatprep.subr.mxu0 0.0
      %1182 = vmatpush1.msra.mxu0 0.0
      %1183 = vmatprep.subr.mxu0 0.0
      %1184 = vmatpush1.msra.mxu0 0.0
      %1185 = vmatprep.subr.mxu0 0.0
      %1186 = vmatpush1.msra.mxu0 0.0
      %1187 = vmatprep.subr.mxu0 0.0
      %1188 = vmatpush1.msra.mxu0 0.0
      %1189 = vmatprep.subr.mxu0 0.0
      %1190 = vmatpush1.msra.mxu0 0.0
      %1191 = vmatprep.subr.mxu0 0.0
      %1192 = vmatpush1.msra.mxu0 0.0
      %1193 = vmatprep.subr.mxu0 0.0
      %1194 = vmatpush1.msra.mxu0 0.0
      %1195 = vmatprep.subr.mxu0 0.0
      %1196 = vmatpush1.msra.mxu0 0.0
      %1197 = vmatprep.subr.mxu0 0.0
      %1198 = vmatpush1.msra.mxu0 0.0
      %1199 = vmatprep.subr.mxu0 0.0
      %1200 = vmatpush1.msra.mxu0 0.0
      %1201 = vmatprep.subr.mxu0 0.0
      %1202 = vmatpush1.msra.mxu0 0.0
      %1203 = vmatprep.subr.mxu0 0.0
      %1204 = vmatpush1.msra.mxu0 0.0
      %1205 = vmatprep.subr.mxu0 0.0
      %1206 = vmatpush1.msra.mxu0 0.0
      %1207 = vmatprep.subr.mxu0 0.0
      %1208 = vmatpush1.msra.mxu0 0.0
      %1209 = vmatprep.subr.mxu0 0.0
      %1210 = vmatpush1.msra.mxu0 0.0
      %1211 = vmatprep.subr.mxu0 0.0
      %1212 = vmatpush1.msra.mxu0 0.0
      %1213 = vmatprep.subr.mxu0 0.0
      %1214 = vmatpush1.msra.mxu0 0.0
      %1215 = vmatprep.subr.mxu0 0.0
      %1216 = vmatpush1.msra.mxu0 0.0
      %1217 = vmatprep.subr.mxu0 0.0
      %1218 = vmatpush1.msra.mxu0 0.0
      %1219 = vmatprep.subr.mxu0 0.0
      %1220 = vmatpush1.msra.mxu0 0.0
      %1221 = vmatprep.subr.mxu0 0.0
      %1222 = vmatpush1.msra.mxu0 0.0
      %1223 = vmatprep.mubr.f32.mxu0 0.0
      %1224 = vmatmul.mubr.f32.gmra.mrb[0].mxu0 %v1148
      %v1225 = vpop.f32.mrb[0].mxu0
      %v1226 = vadd.f32 0.0, %v1225
      %v1227 = vpop.f32.mrb[0].mxu0
      %1228 = vmatprep.mubr.f32.mxu0 0.0
      %1229 = vmatmul.mubr.f32.gmra.mrb[0].mxu0 %v1151
      %v1230 = vpop.f32.mrb[0].mxu0
      %v1231 = vadd.f32 0.0, %v1230
      %v1232 = vpop.f32.mrb[0].mxu0
      %1233 = vmatprep.mubr.f32.mxu0 0.0
      %1234 = vmatmul.mubr.f32.gmra.mrb[0].mxu0 %v1154
      %v1235 = vpop.f32.mrb[0].mxu0
      %v1236 = vadd.f32 0.0, %v1235
      %v1237 = vpop.f32.mrb[0].mxu0
      %1238 = vdwg.mxu0
      %v1239 = vadd.f32 %v1139, %v1226
      %v1240 = vadd.f32 %v1140, %v1231
      %v1241 = vadd.f32 %v1141, %v1236
      %v1242 = vld [vmem:[%s148 + $0x6] sm:$0xff]
      %v1243 = vld [vmem:[%s148 + $0xe] sm:$0xff]
      %v1244 = vld [vmem:[%s148 + $0x16] sm:$0xf]
      %s1245 = scalar_lea.vmem %s1, 88
      %v1246 = vld [vmem:[%s1245] sm:$0x3f]
      %v1248 = vsel %vm154, %v1242, 0
      %v1251 = vsel %vm154, %v1243, 0
      %v1254 = vsel %vm154, %v1244, 0
      %v1257 = vsel %vm164, %v1246, 0
      %1259 = vmatprep.subr.mxu0 0.0
      %1260 = vmatpush1.msra.mxu0 %v1257
      %1261 = vmatprep.subr.mxu0 0.0
      %1262 = vmatpush1.msra.mxu0 0.0
      %1263 = vmatprep.subr.mxu0 0.0
      %1264 = vmatpush1.msra.mxu0 0.0
      %1265 = vmatprep.subr.mxu0 0.0
      %1266 = vmatpush1.msra.mxu0 0.0
      %1267 = vmatprep.subr.mxu0 0.0
      %1268 = vmatpush1.msra.mxu0 0.0
      %1269 = vmatprep.subr.mxu0 0.0
      %1270 = vmatpush1.msra.mxu0 0.0
      %1271 = vmatprep.subr.mxu0 0.0
      %1272 = vmatpush1.msra.mxu0 0.0
      %1273 = vmatprep.subr.mxu0 0.0
      %1274 = vmatpush1.msra.mxu0 0.0
      %1275 = vmatprep.subr.mxu0 0.0
      %1276 = vmatpush1.msra.mxu0 0.0
      %1277 = vmatprep.subr.mxu0 0.0
      %1278 = vmatpush1.msra.mxu0 0.0
      %1279 = vmatprep.subr.mxu0 0.0
      %1280 = vmatpush1.msra.mxu0 0.0
      %1281 = vmatprep.subr.mxu0 0.0
      %1282 = vmatpush1.msra.mxu0 0.0
      %1283 = vmatprep.subr.mxu0 0.0
      %1284 = vmatpush1.msra.mxu0 0.0
      %1285 = vmatprep.subr.mxu0 0.0
      %1286 = vmatpush1.msra.mxu0 0.0
      %1287 = vmatprep.subr.mxu0 0.0
      %1288 = vmatpush1.msra.mxu0 0.0
      %1289 = vmatprep.subr.mxu0 0.0
      %1290 = vmatpush1.msra.mxu0 0.0
      %1291 = vmatprep.subr.mxu0 0.0
      %1292 = vmatpush1.msra.mxu0 0.0
      %1293 = vmatprep.subr.mxu0 0.0
      %1294 = vmatpush1.msra.mxu0 0.0
      %1295 = vmatprep.subr.mxu0 0.0
      %1296 = vmatpush1.msra.mxu0 0.0
      %1297 = vmatprep.subr.mxu0 0.0
      %1298 = vmatpush1.msra.mxu0 0.0
      %1299 = vmatprep.subr.mxu0 0.0
      %1300 = vmatpush1.msra.mxu0 0.0
      %1301 = vmatprep.subr.mxu0 0.0
      %1302 = vmatpush1.msra.mxu0 0.0
      %1303 = vmatprep.subr.mxu0 0.0
      %1304 = vmatpush1.msra.mxu0 0.0
      %1305 = vmatprep.subr.mxu0 0.0
      %1306 = vmatpush1.msra.mxu0 0.0
      %1307 = vmatprep.subr.mxu0 0.0
      %1308 = vmatpush1.msra.mxu0 0.0
      %1309 = vmatprep.subr.mxu0 0.0
      %1310 = vmatpush1.msra.mxu0 0.0
      %1311 = vmatprep.subr.mxu0 0.0
      %1312 = vmatpush1.msra.mxu0 0.0
      %1313 = vmatprep.subr.mxu0 0.0
      %1314 = vmatpush1.msra.mxu0 0.0
      %1315 = vmatprep.subr.mxu0 0.0
      %1316 = vmatpush1.msra.mxu0 0.0
      %1317 = vmatprep.subr.mxu0 0.0
      %1318 = vmatpush1.msra.mxu0 0.0
      %1319 = vmatprep.subr.mxu0 0.0
      %1320 = vmatpush1.msra.mxu0 0.0
      %1321 = vmatprep.subr.mxu0 0.0
      %1322 = vmatpush1.msra.mxu0 0.0
      %1323 = vmatprep.mubr.f32.mxu0 0.0
      %1324 = vmatmul.mubr.f32.gmra.mrb[0].mxu0 %v1248
      %v1325 = vpop.f32.mrb[0].mxu0
      %v1326 = vadd.f32 0.0, %v1325
      %v1327 = vpop.f32.mrb[0].mxu0
      %1328 = vmatprep.mubr.f32.mxu0 0.0
      %1329 = vmatmul.mubr.f32.gmra.mrb[0].mxu0 %v1251
      %v1330 = vpop.f32.mrb[0].mxu0
      %v1331 = vadd.f32 0.0, %v1330
      %v1332 = vpop.f32.mrb[0].mxu0
      %1333 = vmatprep.mubr.f32.mxu0 0.0
      %1334 = vmatmul.mubr.f32.gmra.mrb[0].mxu0 %v1254
      %v1335 = vpop.f32.mrb[0].mxu0
      %v1336 = vadd.f32 0.0, %v1335
      %v1337 = vpop.f32.mrb[0].mxu0
      %1338 = vdwg.mxu0
      %v1339 = vadd.f32 %v1239, %v1326
      %v1340 = vadd.f32 %v1240, %v1331
      %v1341 = vadd.f32 %v1241, %v1336
      %v1342 = vld [vmem:[%s540 + $0x5] sm:$0xff]
      %v1343 = vld [vmem:[%s540 + $0xd] sm:$0xff]
      %v1344 = vld [vmem:[%s540 + $0x15] sm:$0xf]
      %s1345 = scalar_lea.vmem %s1, 96
      %v1346 = vld [vmem:[%s1345] sm:$0x3f]
      %v1348 = vsel %vm154, %v1342, 0
      %v1351 = vsel %vm154, %v1343, 0
      %v1354 = vsel %vm154, %v1344, 0
      %v1357 = vsel %vm164, %v1346, 0
      %1359 = vmatprep.subr.mxu0 0.0
      %1360 = vmatpush1.msra.mxu0 %v1357
      %1361 = vmatprep.subr.mxu0 0.0
      %1362 = vmatpush1.msra.mxu0 0.0
      %1363 = vmatprep.subr.mxu0 0.0
      %1364 = vmatpush1.msra.mxu0 0.0
      %1365 = vmatprep.subr.mxu0 0.0
      %1366 = vmatpush1.msra.mxu0 0.0
      %1367 = vmatprep.subr.mxu0 0.0
      %1368 = vmatpush1.msra.mxu0 0.0
      %1369 = vmatprep.subr.mxu0 0.0
      %1370 = vmatpush1.msra.mxu0 0.0
      %1371 = vmatprep.subr.mxu0 0.0
      %1372 = vmatpush1.msra.mxu0 0.0
      %1373 = vmatprep.subr.mxu0 0.0
      %1374 = vmatpush1.msra.mxu0 0.0
      %1375 = vmatprep.subr.mxu0 0.0
      %1376 = vmatpush1.msra.mxu0 0.0
      %1377 = vmatprep.subr.mxu0 0.0
      %1378 = vmatpush1.msra.mxu0 0.0
      %1379 = vmatprep.subr.mxu0 0.0
      %1380 = vmatpush1.msra.mxu0 0.0
      %1381 = vmatprep.subr.mxu0 0.0
      %1382 = vmatpush1.msra.mxu0 0.0
      %1383 = vmatprep.subr.mxu0 0.0
      %1384 = vmatpush1.msra.mxu0 0.0
      %1385 = vmatprep.subr.mxu0 0.0
      %1386 = vmatpush1.msra.mxu0 0.0
      %1387 = vmatprep.subr.mxu0 0.0
      %1388 = vmatpush1.msra.mxu0 0.0
      %1389 = vmatprep.subr.mxu0 0.0
      %1390 = vmatpush1.msra.mxu0 0.0
      %1391 = vmatprep.subr.mxu0 0.0
      %1392 = vmatpush1.msra.mxu0 0.0
      %1393 = vmatprep.subr.mxu0 0.0
      %1394 = vmatpush1.msra.mxu0 0.0
      %1395 = vmatprep.subr.mxu0 0.0
      %1396 = vmatpush1.msra.mxu0 0.0
      %1397 = vmatprep.subr.mxu0 0.0
      %1398 = vmatpush1.msra.mxu0 0.0
      %1399 = vmatprep.subr.mxu0 0.0
      %1400 = vmatpush1.msra.mxu0 0.0
      %1401 = vmatprep.subr.mxu0 0.0
      %1402 = vmatpush1.msra.mxu0 0.0
      %1403 = vmatprep.subr.mxu0 0.0
      %1404 = vmatpush1.msra.mxu0 0.0
      %1405 = vmatprep.subr.mxu0 0.0
      %1406 = vmatpush1.msra.mxu0 0.0
      %1407 = vmatprep.subr.mxu0 0.0
      %1408 = vmatpush1.msra.mxu0 0.0
      %1409 = vmatprep.subr.mxu0 0.0
      %1410 = vmatpush1.msra.mxu0 0.0
      %1411 = vmatprep.subr.mxu0 0.0
      %1412 = vmatpush1.msra.mxu0 0.0
      %1413 = vmatprep.subr.mxu0 0.0
      %1414 = vmatpush1.msra.mxu0 0.0
      %1415 = vmatprep.subr.mxu0 0.0
      %1416 = vmatpush1.msra.mxu0 0.0
      %1417 = vmatprep.subr.mxu0 0.0
      %1418 = vmatpush1.msra.mxu0 0.0
      %1419 = vmatprep.subr.mxu0 0.0
      %1420 = vmatpush1.msra.mxu0 0.0
      %1421 = vmatprep.subr.mxu0 0.0
      %1422 = vmatpush1.msra.mxu0 0.0
      %1423 = vmatprep.mubr.f32.mxu0 0.0
      %1424 = vmatmul.mubr.f32.gmra.mrb[0].mxu0 %v1348
      %v1425 = vpop.f32.mrb[0].mxu0
      %v1426 = vadd.f32 0.0, %v1425
      %v1427 = vpop.f32.mrb[0].mxu0
      %1428 = vmatprep.mubr.f32.mxu0 0.0
      %1429 = vmatmul.mubr.f32.gmra.mrb[0].mxu0 %v1351
      %v1430 = vpop.f32.mrb[0].mxu0
      %v1431 = vadd.f32 0.0, %v1430
      %v1432 = vpop.f32.mrb[0].mxu0
      %1433 = vmatprep.mubr.f32.mxu0 0.0
      %1434 = vmatmul.mubr.f32.gmra.mrb[0].mxu0 %v1354
      %v1435 = vpop.f32.mrb[0].mxu0
      %v1436 = vadd.f32 0.0, %v1435
      %v1437 = vpop.f32.mrb[0].mxu0
      %1438 = vdwg.mxu0
      %v1439 = vadd.f32 %v1339, %v1426
      %v1440 = vadd.f32 %v1340, %v1431
      %v1441 = vadd.f32 %v1341, %v1436
      %v1442 = vld [vmem:[%s641 + $0x5] sm:$0xff]
      %v1443 = vld [vmem:[%s641 + $0xd] sm:$0xff]
      %v1444 = vld [vmem:[%s641 + $0x15] sm:$0xf]
      %s1445 = scalar_lea.vmem %s1, 104
      %v1446 = vld [vmem:[%s1445] sm:$0x3f]
      %v1448 = vsel %vm154, %v1442, 0
      %v1451 = vsel %vm154, %v1443, 0
      %v1454 = vsel %vm154, %v1444, 0
      %v1457 = vsel %vm164, %v1446, 0
      %1459 = vmatprep.subr.mxu0 0.0
      %1460 = vmatpush1.msra.mxu0 %v1457
      %1461 = vmatprep.subr.mxu0 0.0
      %1462 = vmatpush1.msra.mxu0 0.0
      %1463 = vmatprep.subr.mxu0 0.0
      %1464 = vmatpush1.msra.mxu0 0.0
      %1465 = vmatprep.subr.mxu0 0.0
      %1466 = vmatpush1.msra.mxu0 0.0
      %1467 = vmatprep.subr.mxu0 0.0
      %1468 = vmatpush1.msra.mxu0 0.0
      %1469 = vmatprep.subr.mxu0 0.0
      %1470 = vmatpush1.msra.mxu0 0.0
      %1471 = vmatprep.subr.mxu0 0.0
      %1472 = vmatpush1.msra.mxu0 0.0
      %1473 = vmatprep.subr.mxu0 0.0
      %1474 = vmatpush1.msra.mxu0 0.0
      %1475 = vmatprep.subr.mxu0 0.0
      %1476 = vmatpush1.msra.mxu0 0.0
      %1477 = vmatprep.subr.mxu0 0.0
      %1478 = vmatpush1.msra.mxu0 0.0
      %1479 = vmatprep.subr.mxu0 0.0
      %1480 = vmatpush1.msra.mxu0 0.0
      %1481 = vmatprep.subr.mxu0 0.0
      %1482 = vmatpush1.msra.mxu0 0.0
      %1483 = vmatprep.subr.mxu0 0.0
      %1484 = vmatpush1.msra.mxu0 0.0
      %1485 = vmatprep.subr.mxu0 0.0
      %1486 = vmatpush1.msra.mxu0 0.0
      %1487 = vmatprep.subr.mxu0 0.0
      %1488 = vmatpush1.msra.mxu0 0.0
      %1489 = vmatprep.subr.mxu0 0.0
      %1490 = vmatpush1.msra.mxu0 0.0
      %1491 = vmatprep.subr.mxu0 0.0
      %1492 = vmatpush1.msra.mxu0 0.0
      %1493 = vmatprep.subr.mxu0 0.0
      %1494 = vmatpush1.msra.mxu0 0.0
      %1495 = vmatprep.subr.mxu0 0.0
      %1496 = vmatpush1.msra.mxu0 0.0
      %1497 = vmatprep.subr.mxu0 0.0
      %1498 = vmatpush1.msra.mxu0 0.0
      %1499 = vmatprep.subr.mxu0 0.0
      %1500 = vmatpush1.msra.mxu0 0.0
      %1501 = vmatprep.subr.mxu0 0.0
      %1502 = vmatpush1.msra.mxu0 0.0
      %1503 = vmatprep.subr.mxu0 0.0
      %1504 = vmatpush1.msra.mxu0 0.0
      %1505 = vmatprep.subr.mxu0 0.0
      %1506 = vmatpush1.msra.mxu0 0.0
      %1507 = vmatprep.subr.mxu0 0.0
      %1508 = vmatpush1.msra.mxu0 0.0
      %1509 = vmatprep.subr.mxu0 0.0
      %1510 = vmatpush1.msra.mxu0 0.0
      %1511 = vmatprep.subr.mxu0 0.0
      %1512 = vmatpush1.msra.mxu0 0.0
      %1513 = vmatprep.subr.mxu0 0.0
      %1514 = vmatpush1.msra.mxu0 0.0
      %1515 = vmatprep.subr.mxu0 0.0
      %1516 = vmatpush1.msra.mxu0 0.0
      %1517 = vmatprep.subr.mxu0 0.0
      %1518 = vmatpush1.msra.mxu0 0.0
      %1519 = vmatprep.subr.mxu0 0.0
      %1520 = vmatpush1.msra.mxu0 0.0
      %1521 = vmatprep.subr.mxu0 0.0
      %1522 = vmatpush1.msra.mxu0 0.0
      %1523 = vmatprep.mubr.f32.mxu0 0.0
      %1524 = vmatmul.mubr.f32.gmra.mrb[0].mxu0 %v1448
      %v1525 = vpop.f32.mrb[0].mxu0
      %v1526 = vadd.f32 0.0, %v1525
      %v1527 = vpop.f32.mrb[0].mxu0
      %1528 = vmatprep.mubr.f32.mxu0 0.0
      %1529 = vmatmul.mubr.f32.gmra.mrb[0].mxu0 %v1451
      %v1530 = vpop.f32.mrb[0].mxu0
      %v1531 = vadd.f32 0.0, %v1530
      %v1532 = vpop.f32.mrb[0].mxu0
      %1533 = vmatprep.mubr.f32.mxu0 0.0
      %1534 = vmatmul.mubr.f32.gmra.mrb[0].mxu0 %v1454
      %v1535 = vpop.f32.mrb[0].mxu0
      %v1536 = vadd.f32 0.0, %v1535
      %v1537 = vpop.f32.mrb[0].mxu0
      %1538 = vdwg.mxu0
      %v1539 = vadd.f32 %v1439, %v1526
      %v1540 = vadd.f32 %v1440, %v1531
      %v1541 = vadd.f32 %v1441, %v1536
      %v1542 = vld [vmem:[%s540 + $0x6] sm:$0xff]
      %v1543 = vld [vmem:[%s540 + $0xe] sm:$0xff]
      %v1544 = vld [vmem:[%s540 + $0x16] sm:$0xf]
      %s1545 = scalar_lea.vmem %s1, 112
      %v1546 = vld [vmem:[%s1545] sm:$0x3f]
      %v1548 = vsel %vm154, %v1542, 0
      %v1551 = vsel %vm154, %v1543, 0
      %v1554 = vsel %vm154, %v1544, 0
      %v1557 = vsel %vm164, %v1546, 0
      %1559 = vmatprep.subr.mxu0 0.0
      %1560 = vmatpush1.msra.mxu0 %v1557
      %1561 = vmatprep.subr.mxu0 0.0
      %1562 = vmatpush1.msra.mxu0 0.0
      %1563 = vmatprep.subr.mxu0 0.0
      %1564 = vmatpush1.msra.mxu0 0.0
      %1565 = vmatprep.subr.mxu0 0.0
      %1566 = vmatpush1.msra.mxu0 0.0
      %1567 = vmatprep.subr.mxu0 0.0
      %1568 = vmatpush1.msra.mxu0 0.0
      %1569 = vmatprep.subr.mxu0 0.0
      %1570 = vmatpush1.msra.mxu0 0.0
      %1571 = vmatprep.subr.mxu0 0.0
      %1572 = vmatpush1.msra.mxu0 0.0
      %1573 = vmatprep.subr.mxu0 0.0
      %1574 = vmatpush1.msra.mxu0 0.0
      %1575 = vmatprep.subr.mxu0 0.0
      %1576 = vmatpush1.msra.mxu0 0.0
      %1577 = vmatprep.subr.mxu0 0.0
      %1578 = vmatpush1.msra.mxu0 0.0
      %1579 = vmatprep.subr.mxu0 0.0
      %1580 = vmatpush1.msra.mxu0 0.0
      %1581 = vmatprep.subr.mxu0 0.0
      %1582 = vmatpush1.msra.mxu0 0.0
      %1583 = vmatprep.subr.mxu0 0.0
      %1584 = vmatpush1.msra.mxu0 0.0
      %1585 = vmatprep.subr.mxu0 0.0
      %1586 = vmatpush1.msra.mxu0 0.0
      %1587 = vmatprep.subr.mxu0 0.0
      %1588 = vmatpush1.msra.mxu0 0.0
      %1589 = vmatprep.subr.mxu0 0.0
      %1590 = vmatpush1.msra.mxu0 0.0
      %1591 = vmatprep.subr.mxu0 0.0
      %1592 = vmatpush1.msra.mxu0 0.0
      %1593 = vmatprep.subr.mxu0 0.0
      %1594 = vmatpush1.msra.mxu0 0.0
      %1595 = vmatprep.subr.mxu0 0.0
      %1596 = vmatpush1.msra.mxu0 0.0
      %1597 = vmatprep.subr.mxu0 0.0
      %1598 = vmatpush1.msra.mxu0 0.0
      %1599 = vmatprep.subr.mxu0 0.0
      %1600 = vmatpush1.msra.mxu0 0.0
      %1601 = vmatprep.subr.mxu0 0.0
      %1602 = vmatpush1.msra.mxu0 0.0
      %1603 = vmatprep.subr.mxu0 0.0
      %1604 = vmatpush1.msra.mxu0 0.0
      %1605 = vmatprep.subr.mxu0 0.0
      %1606 = vmatpush1.msra.mxu0 0.0
      %1607 = vmatprep.subr.mxu0 0.0
      %1608 = vmatpush1.msra.mxu0 0.0
      %1609 = vmatprep.subr.mxu0 0.0
      %1610 = vmatpush1.msra.mxu0 0.0
      %1611 = vmatprep.subr.mxu0 0.0
      %1612 = vmatpush1.msra.mxu0 0.0
      %1613 = vmatprep.subr.mxu0 0.0
      %1614 = vmatpush1.msra.mxu0 0.0
      %1615 = vmatprep.subr.mxu0 0.0
      %1616 = vmatpush1.msra.mxu0 0.0
      %1617 = vmatprep.subr.mxu0 0.0
      %1618 = vmatpush1.msra.mxu0 0.0
      %1619 = vmatprep.subr.mxu0 0.0
      %1620 = vmatpush1.msra.mxu0 0.0
      %1621 = vmatprep.subr.mxu0 0.0
      %1622 = vmatpush1.msra.mxu0 0.0
      %1623 = vmatprep.mubr.f32.mxu0 0.0
      %1624 = vmatmul.mubr.f32.gmra.mrb[0].mxu0 %v1548
      %v1625 = vpop.f32.mrb[0].mxu0
      %v1626 = vadd.f32 0.0, %v1625
      %v1627 = vpop.f32.mrb[0].mxu0
      %1628 = vmatprep.mubr.f32.mxu0 0.0
      %1629 = vmatmul.mubr.f32.gmra.mrb[0].mxu0 %v1551
      %v1630 = vpop.f32.mrb[0].mxu0
      %v1631 = vadd.f32 0.0, %v1630
      %v1632 = vpop.f32.mrb[0].mxu0
      %1633 = vmatprep.mubr.f32.mxu0 0.0
      %1634 = vmatmul.mubr.f32.gmra.mrb[0].mxu0 %v1554
      %v1635 = vpop.f32.mrb[0].mxu0
      %v1636 = vadd.f32 0.0, %v1635
      %v1637 = vpop.f32.mrb[0].mxu0
      %1638 = vdwg.mxu0
      %v1639 = vadd.f32 %v1539, %v1626
      %v1640 = vadd.f32 %v1540, %v1631
      %v1641 = vadd.f32 %v1541, %v1636
      %v1642 = vld [vmem:[%s641 + $0x6] sm:$0xff]
      %v1643 = vld [vmem:[%s641 + $0xe] sm:$0xff]
      %v1644 = vld [vmem:[%s641 + $0x16] sm:$0xf]
      %s1645 = scalar_lea.vmem %s1, 120
      %v1646 = vld [vmem:[%s1645] sm:$0x3f]
      %v1648 = vsel %vm154, %v1642, 0
      %v1651 = vsel %vm154, %v1643, 0
      %v1654 = vsel %vm154, %v1644, 0
      %v1657 = vsel %vm164, %v1646, 0
      %1659 = vmatprep.subr.mxu0 0.0
      %1660 = vmatpush1.msra.mxu0 %v1657
      %1661 = vmatprep.subr.mxu0 0.0
      %1662 = vmatpush1.msra.mxu0 0.0
      %1663 = vmatprep.subr.mxu0 0.0
      %1664 = vmatpush1.msra.mxu0 0.0
      %1665 = vmatprep.subr.mxu0 0.0
      %1666 = vmatpush1.msra.mxu0 0.0
      %1667 = vmatprep.subr.mxu0 0.0
      %1668 = vmatpush1.msra.mxu0 0.0
      %1669 = vmatprep.subr.mxu0 0.0
      %1670 = vmatpush1.msra.mxu0 0.0
      %1671 = vmatprep.subr.mxu0 0.0
      %1672 = vmatpush1.msra.mxu0 0.0
      %1673 = vmatprep.subr.mxu0 0.0
      %1674 = vmatpush1.msra.mxu0 0.0
      %1675 = vmatprep.subr.mxu0 0.0
      %1676 = vmatpush1.msra.mxu0 0.0
      %1677 = vmatprep.subr.mxu0 0.0
      %1678 = vmatpush1.msra.mxu0 0.0
      %1679 = vmatprep.subr.mxu0 0.0
      %1680 = vmatpush1.msra.mxu0 0.0
      %1681 = vmatprep.subr.mxu0 0.0
      %1682 = vmatpush1.msra.mxu0 0.0
      %1683 = vmatprep.subr.mxu0 0.0
      %1684 = vmatpush1.msra.mxu0 0.0
      %1685 = vmatprep.subr.mxu0 0.0
      %1686 = vmatpush1.msra.mxu0 0.0
      %1687 = vmatprep.subr.mxu0 0.0
      %1688 = vmatpush1.msra.mxu0 0.0
      %1689 = vmatprep.subr.mxu0 0.0
      %1690 = vmatpush1.msra.mxu0 0.0
      %1691 = vmatprep.subr.mxu0 0.0
      %1692 = vmatpush1.msra.mxu0 0.0
      %1693 = vmatprep.subr.mxu0 0.0
      %1694 = vmatpush1.msra.mxu0 0.0
      %1695 = vmatprep.subr.mxu0 0.0
      %1696 = vmatpush1.msra.mxu0 0.0
      %1697 = vmatprep.subr.mxu0 0.0
      %1698 = vmatpush1.msra.mxu0 0.0
      %1699 = vmatprep.subr.mxu0 0.0
      %1700 = vmatpush1.msra.mxu0 0.0
      %1701 = vmatprep.subr.mxu0 0.0
      %1702 = vmatpush1.msra.mxu0 0.0
      %1703 = vmatprep.subr.mxu0 0.0
      %1704 = vmatpush1.msra.mxu0 0.0
      %1705 = vmatprep.subr.mxu0 0.0
      %1706 = vmatpush1.msra.mxu0 0.0
      %1707 = vmatprep.subr.mxu0 0.0
      %1708 = vmatpush1.msra.mxu0 0.0
      %1709 = vmatprep.subr.mxu0 0.0
      %1710 = vmatpush1.msra.mxu0 0.0
      %1711 = vmatprep.subr.mxu0 0.0
      %1712 = vmatpush1.msra.mxu0 0.0
      %1713 = vmatprep.subr.mxu0 0.0
      %1714 = vmatpush1.msra.mxu0 0.0
      %1715 = vmatprep.subr.mxu0 0.0
      %1716 = vmatpush1.msra.mxu0 0.0
      %1717 = vmatprep.subr.mxu0 0.0
      %1718 = vmatpush1.msra.mxu0 0.0
      %1719 = vmatprep.subr.mxu0 0.0
      %1720 = vmatpush1.msra.mxu0 0.0
      %1721 = vmatprep.subr.mxu0 0.0
      %1722 = vmatpush1.msra.mxu0 0.0
      %1723 = vmatprep.mubr.f32.mxu0 0.0
      %1724 = vmatmul.mubr.f32.gmra.mrb[0].mxu0 %v1648
      %v1725 = vpop.f32.mrb[0].mxu0
      %v1726 = vadd.f32 0.0, %v1725
      %v1727 = vpop.f32.mrb[0].mxu0
      %1728 = vmatprep.mubr.f32.mxu0 0.0
      %1729 = vmatmul.mubr.f32.gmra.mrb[0].mxu0 %v1651
      %v1730 = vpop.f32.mrb[0].mxu0
      %v1731 = vadd.f32 0.0, %v1730
      %v1732 = vpop.f32.mrb[0].mxu0
      %1733 = vmatprep.mubr.f32.mxu0 0.0
      %1734 = vmatmul.mubr.f32.gmra.mrb[0].mxu0 %v1654
      %v1735 = vpop.f32.mrb[0].mxu0
      %v1736 = vadd.f32 0.0, %v1735
      %v1737 = vpop.f32.mrb[0].mxu0
      %1738 = vdwg.mxu0
      %v1739 = vadd.f32 %v1639, %v1726
      %v1740 = vadd.f32 %v1640, %v1731
      %v1741 = vadd.f32 %v1641, %v1736
      %vm1742 = vcmask 80896
      %1743 = vst.msk [vmem:[%s143] sm:$0xff] %vm1742, %v1739
      %1744 = vst.msk [vmem:[%s143 + $0x8] sm:$0xff] %vm1742, %v1740
      %vm1745 = vcmask 76800
      %1746 = vst.msk [vmem:[%s143 + $0x10] sm:$0xf] %vm1745, %v1741
      %p1747 = scmp.lt.s32.totalorder %s13, 1
      %s1748 = scalar_select %p1747, %s13, 1
      %s1749 = smul.addr %s1748, 3
      %s1750 = smul.addr %s1749, 8
      %s1751 = scalar_lea.vmem %s2, %s1750
      // Predicated region
      $region29: #{tpu_custom_call.1} parent=27 // pred_check
        %p1752 = pneg %p78
      $region30: #{tpu_custom_call.1} parent=27 // pred_check_branch
        %1754 = sbr.rel (%p1752) target = $region32
      $region31: #{tpu_custom_call.1} parent=27 // pred_region
        _
      $region32: #{tpu_custom_call.1} parent=27 // pred_fallthru
        _
    $region28: #{tpu_custom_call.1} parent=5 // pred_fallthru
      _
    %p1755 = scmp.le.s32.totalorder 2, %s8
    // Predicated region
    $region33: #{tpu_custom_call.1} parent=5 // pred_check
      %p1756 = pneg %p1755
    $region34: #{tpu_custom_call.1} parent=5 // pred_check_branch
      %1758 = sbr.rel (%p1756) target = $region36
    $region35: #{tpu_custom_call.1} parent=5 // pred_region
      %s1759 = ssub.s32 %s8, 2
      // Predicated region
      $region37: #{tpu_custom_call.1} parent=35 // pred_check
        %p1760 = pneg %p84
      $region38: #{tpu_custom_call.1} parent=35 // pred_check_branch
        %1762 = sbr.rel (%p1760) target = $region40
      $region39: #{tpu_custom_call.1} parent=35 // pred_region
        %p1763 = scmp.lt.s32.totalorder %s14, 1
        %s1764 = scalar_select %p1763, %s14, 1
        %s1765 = smul.addr %s1764, 3
        %s1766 = smul.addr %s1765, 8
        %s1767 = scalar_lea.vmem %s2, %s1766
      $region40: #{tpu_custom_call.1} parent=35 // pred_fallthru
        _
    $region36: #{tpu_custom_call.1} parent=5 // pred_fallthru
      _
  $region6: #{tpu_custom_call.1} parent=0 // loop_footer
    %s12 = sadd.s32 1, %s8
  $region7: #{tpu_custom_call.1} parent=0 // loop_footer_branch
    %7 = sbr.rel target = $region3
  $region8: #{tpu_custom_call.1} parent=0 // loop_exit
    _

</llo_original>
